<compile_context>
chip_gen: v7x
topology: tpu7x:2x2x1
jax: 0.10.0
libtpu: 0.0.40
codegen_flags: <defaults>
</compile_context>

<pallas_src>
import jax
import jax.numpy as jnp
from jax.experimental import pallas as pl
from jax.experimental.pallas import tpu as pltpu


def _round_up(x, m):
    return (x + m - 1) // m * m


def _cdiv(a, b):
    return (a + b - 1) // b


# --------------------------------------------------------------------------
# Pallas kernel: fused share-bottom MLP + packed predict heads + sigmoid
# --------------------------------------------------------------------------
def _sharebottom_kernel(x_ref, w0_ref, b0_ref, w1_ref, b1_ref, pw_ref, pb_ref,
                        out_ref):
    # Shared layer 0: Linear (BN(eval) pre-folded into w/b) -> ReLU.
    h = jnp.dot(x_ref[...], w0_ref[...], preferred_element_type=jnp.float32)
    h = jnp.maximum(h + b0_ref[...], 0.0)
    # Shared layer 1: Linear -> ReLU.
    h = jnp.dot(h.astype(jnp.bfloat16), w1_ref[...],
                preferred_element_type=jnp.float32)
    h = jnp.maximum(h + b1_ref[...], 0.0)
    # Per-task predict heads packed column-wise into a 128-lane slab + sigmoid.
    logits = jnp.dot(h.astype(jnp.bfloat16), pw_ref[...],
                     preferred_element_type=jnp.float32)
    out_ref[...] = jax.nn.sigmoid(logits + pb_ref[...]).astype(out_ref.dtype)


def _pick_batch_tile(B):
    """Batch tile: as large as possible (grid-step overhead bound otherwise),
    capped at 8192 rows (~5.3 MiB double-buffered -> safe under v5e's 16 MiB scoped
    VMEM), with an even tile count for B > 256 so both v7x TensorCores get work."""
    TB_MAX = 8192
    if B <= 256:
        return _round_up(B, 16)          # one small tile; splitting only adds overhead
    n_tiles = 2
    while _cdiv(B, n_tiles) > TB_MAX:
        n_tiles += 2                     # keep the tile count even (v7x megacore balance)
    return _round_up(_cdiv(B, n_tiles), 128)


def _run_sharebottom(x_bf16, mlp):
    """x_bf16: (B, D_in) bfloat16.  Returns (B, out_lanes) bfloat16 (padded lanes incl.)."""
    B, D = x_bf16.shape
    TB = _pick_batch_tile(B)
    Bp = _round_up(B, TB)
    if Bp != B:
        x_bf16 = jnp.pad(x_bf16, ((0, Bp - B), (0, 0)))

    w0, b0 = mlp["w0"], mlp["b0"]
    w1, b1 = mlp["w1"], mlp["b1"]
    pw, pb = mlp["pw"], mlp["pb"]
    u0, u1 = w0.shape[1], w1.shape[1]
    out_lanes = pw.shape[1]

    const = lambda i: (0, 0)             # weights/biases: same (full) block every step

    # Advisory cost so XLA overlaps the embedding/FMA glue with this custom call.
    flops = 2 * Bp * (D * u0 + u0 * u1 + u1 * out_lanes)
    transcendentals = Bp * out_lanes                                  # sigmoid exp
    bytes_accessed = (Bp * 2 * (D + out_lanes)                        # bf16 x in + bf16 out
                      + 2 * (D * u0 + u0 * u1 + u1 * out_lanes)       # bf16 weights
                      + 4 * (u0 + u1 + out_lanes))                    # f32 biases

    out = pl.pallas_call(
        _sharebottom_kernel,
        out_shape=jax.ShapeDtypeStruct((Bp, out_lanes), jnp.bfloat16),
        grid=(Bp // TB,),
        in_specs=[
            pl.BlockSpec((TB, D), lambda i: (i, 0)),        # streamed activations
            pl.BlockSpec((D, u0), const),                   # resident weights/biases
            pl.BlockSpec((1, u0), const),
            pl.BlockSpec((u0, u1), const),
            pl.BlockSpec((1, u1), const),
            pl.BlockSpec((u1, out_lanes), const),
            pl.BlockSpec((1, out_lanes), const),
        ],
        out_specs=pl.BlockSpec((TB, out_lanes), lambda i: (i, 0)),
        compiler_params=pltpu.CompilerParams(
            dimension_semantics=("parallel",)),             # shard batch tiles across TCs
        cost_estimate=pl.CostEstimate(flops=flops,
                                      transcendentals=transcendentals,
                                      bytes_accessed=bytes_accessed),
    )(x_bf16, w0, b0, w1, b1, pw, pb)
    return out[:B]


# --------------------------------------------------------------------------
# Feature "glue" (embedding gather + numeric FMA), emitted directly in bf16
# --------------------------------------------------------------------------
def _feature_glue(cate_feat, num_feat, params):
    B = cate_feat.shape[0]
    # Categorical embeddings: single gather over the row-fused bf16 table.
    ids = cate_feat + params["cate_offsets"][None, :]                 # (B, n_cate)
    cate_cat = jnp.take(params["cate_table"], ids, axis=0).reshape(B, -1)   # bf16
    # Numeric features: all Linear(1, emb_dim) projections as one broadcasted FMA
    # (f32 compute, bf16 result fused into the same elementwise pass).
    num_cat = (num_feat[:, :, None] * params["num_w"][None, :, :]
               + params["num_b"][None, :, :]).astype(jnp.bfloat16).reshape(B, -1)
    return jnp.concatenate([cate_cat, num_cat], axis=1)              # (B, emb_dim*2) bf16


# --------------------------------------------------------------------------
# Full module forward
# --------------------------------------------------------------------------
def custom_sharebottom_forward(cate_feat, num_feat, params):
    fea_emb = _feature_glue(cate_feat, num_feat, params)
    out_dim = params["output_dim"]
    task_num = params["task_num"]
    real_cols = task_num * out_dim
    preds_flat = _run_sharebottom(fea_emb, params["mlp"])[:, :real_cols]
    preds_flat = preds_flat.astype(jnp.float32)
    outputs = [preds_flat[:, t * out_dim:(t + 1) * out_dim] for t in range(task_num)]
    return {"pred": outputs}


# Pure-JAX reference (same bf16 operand rounding as the kernel) for validation.
def _reference_forward(cate_feat, num_feat, params):
    x = _feature_glue(cate_feat, num_feat, params).astype(jnp.float32)
    m = params["mlp"]
    h = jnp.maximum(x @ m["w0"].astype(jnp.float32) + m["b0"], 0.0)
    h = h.astype(jnp.bfloat16).astype(jnp.float32)
    h = jnp.maximum(h @ m["w1"].astype(jnp.float32) + m["b1"], 0.0)
    h = h.astype(jnp.bfloat16).astype(jnp.float32)
    logits = h @ m["pw"].astype(jnp.float32) + m["pb"]
    probs = jax.nn.sigmoid(logits)
    real_cols = params["task_num"] * params["output_dim"]
    return probs[:, :real_cols]


# --------------------------------------------------------------------------
# Deterministic parameter init (mimics fresh PyTorch init, inference mode)
# --------------------------------------------------------------------------
def init_params(key, config):
    emb_dim = config["emb_dim"]
    cate_fea_num = config["cate_fea_num"]
    num_fea_ids = config["num_fea_ids"]
    share_units = config["share_units"]      # last entry must be 256
    task_num = len(config["task_units"])
    output_dim = config["output_dim"]

    def uni(k, shape, fan_in):
        bound = 1.0 / jnp.sqrt(jnp.float32(fan_in))
        return jax.random.uniform(k, shape, jnp.float32, -bound, bound)

    keys = iter(jax.random.split(key, 64))

    # nn.Embedding default: N(0, 1).  Fuse tables row-wise with per-feature offsets.
    # Table stored bf16 (matmul operands are bf16-rounded anyway) so the gather emits
    # bf16 directly and no separate activation-cast pass is needed.
    tables = [jax.random.normal(next(keys), (card, emb_dim), jnp.float32)
              for card in cate_fea_num]
    cate_table = jnp.concatenate(tables, axis=0).astype(jnp.bfloat16)
    offs, acc = [], 0
    for card in cate_fea_num:
        offs.append(acc)
        acc += card
    cate_offsets = jnp.asarray(offs, dtype=jnp.int32)

    # nn.Linear(1, emb_dim) per numeric feature, stacked (n_num, emb_dim).
    num_w = jnp.stack([uni(next(keys), (emb_dim,), 1) for _ in range(num_fea_ids)], 0)
    num_b = jnp.stack([uni(next(keys), (emb_dim,), 1) for _ in range(num_fea_ids)], 0)

    d_in = emb_dim * 2
    u0, u1 = share_units[0], share_units[1]
    eps = 1e-5

    def bn_fold(units):
        gamma = jnp.ones((1, units), jnp.float32)
        beta = jnp.zeros((1, units), jnp.float32)
        r_mean = jnp.zeros((1, units), jnp.float32)
        r_var = jnp.ones((1, units), jnp.float32)
        s = gamma / jnp.sqrt(r_var + eps)
        t = beta - r_mean * s
        return s, t

    # Shared layer 0/1 with BatchNorm(eval) folded into weights and biases.
    w0 = uni(next(keys), (d_in, u0), d_in)
    b0 = uni(next(keys), (1, u0), d_in)
    s0, t0 = bn_fold(u0)
    w0, b0 = w0 * s0, b0 * s0 + t0

    w1 = uni(next(keys), (u0, u1), u0)
    b1 = uni(next(keys), (1, u1), u0)
    s1, t1 = bn_fold(u1)
    w1, b1 = w1 * s1, b1 * s1 + t1

    # Per-task Linear(256, output_dim) heads packed column-wise, zero-padded to a
    # 128-lane multiple (lane-dense unmasked output stores).  Padded columns come out
    # as sigmoid(0)=0.5 and are sliced off in the wrapper.
    real_cols = task_num * output_dim
    assert real_cols > 0
    out_lanes = max(128, _round_up(real_cols, 128))
    pw = jnp.concatenate([uni(next(keys), (u1, output_dim), u1)
                          for _ in range(task_num)], axis=1)
    pb = jnp.concatenate([uni(next(keys), (1, output_dim), u1)
                          for _ in range(task_num)], axis=1)
    pw = jnp.pad(pw, ((0, 0), (0, out_lanes - real_cols)))
    pb = jnp.pad(pb, ((0, 0), (0, out_lanes - real_cols)))

    mlp = {
        "w0": w0.astype(jnp.bfloat16), "b0": b0,
        "w1": w1.astype(jnp.bfloat16), "b1": b1,
        "pw": pw.astype(jnp.bfloat16), "pb": pb,
    }
    return {
        "cate_table": cate_table,
        "cate_offsets": cate_offsets,
        "num_w": num_w,
        "num_b": num_b,
        "mlp": mlp,
        "task_num": task_num,
        "output_dim": output_dim,
    }


if __name__ == "__main__":
    config = {
        "emb_dim": 16,
        "dropout_rate": 0.1,           # inference mode -> identity
        "num_fea_ids": 1,
        "device": "tpu",
        "cate_fea_num": [50],          # one categorical feature with 50 ids
        "share_units": [128, 256],     # shared MLP ends at 256 (predict layers expect 256)
        "task_units": [[64], [64]],    # 2 tasks
        "output_dim": 1,
    }
    B = 300   # exercises the 2-tile parallel grid (TB=256) and batch-row padding

    key = jax.random.PRNGKey(0)
    k_param, k_cate, k_num = jax.random.split(key, 3)
    params = init_params(k_param, config)

    cate_feat = jax.random.randint(k_cate, (B, len(config["cate_fea_num"])),
                                   0, config["cate_fea_num"][0], dtype=jnp.int32)
    num_feat = jax.random.normal(k_num, (B, config["num_fea_ids"]), jnp.float32)

    out = jax.block_until_ready(custom_sharebottom_forward(cate_feat, num_feat, params))
    ref = jax.block_until_ready(_reference_forward(cate_feat, num_feat, params))

    preds = out["pred"]
    assert len(preds) == params["task_num"]
    got = jnp.concatenate(preds, axis=1)
    assert got.shape == (B, params["task_num"] * params["output_dim"])
    assert bool(jnp.all((got >= 0.0) & (got <= 1.0)))
    # Kernel writes back bf16 probabilities (f32 compute, bf16 store) -> ~2e-3 rounding.
    assert bool(jnp.max(jnp.abs(got - ref)) < 5e-3), "mismatch vs pure-JAX reference"
    print("KERNEL_OK")
</pallas_src>

<mosaic_0001>
module attributes {stable_mosaic.version = 11 : i64} {
  func.func @_sharebottom_kernel(%arg0: i32, %arg1: memref<256x32xbf16, #tpu.memory_space<vmem>>, %arg2: memref<32x128xbf16, #tpu.memory_space<vmem>>, %arg3: memref<1x128xf32, #tpu.memory_space<vmem>>, %arg4: memref<128x256xbf16, #tpu.memory_space<vmem>>, %arg5: memref<1x256xf32, #tpu.memory_space<vmem>>, %arg6: memref<256x128xbf16, #tpu.memory_space<vmem>>, %arg7: memref<1x128xf32, #tpu.memory_space<vmem>>, %arg8: memref<256x128xbf16, #tpu.memory_space<vmem>>) attributes {dimension_semantics = [#tpu.dimension_semantics<parallel>], iteration_bounds = array<i64: 2>, scalar_prefetch = 0 : i64, scratch_operands = 0 : i64, tpu.core_type = #tpu.core_type<tc>, window_params = [{transform_indices = @transform_0, window_bounds = array<i64: 256, 32>}, {pipeline_mode = #tpu.pipeline_mode<synchronous>, transform_indices = @transform_1, window_bounds = array<i64: 32, 128>}, {pipeline_mode = #tpu.pipeline_mode<synchronous>, transform_indices = @transform_2, window_bounds = array<i64: 1, 128>}, {pipeline_mode = #tpu.pipeline_mode<synchronous>, transform_indices = @transform_3, window_bounds = array<i64: 128, 256>}, {pipeline_mode = #tpu.pipeline_mode<synchronous>, transform_indices = @transform_4, window_bounds = array<i64: 1, 256>}, {pipeline_mode = #tpu.pipeline_mode<synchronous>, transform_indices = @transform_5, window_bounds = array<i64: 256, 128>}, {pipeline_mode = #tpu.pipeline_mode<synchronous>, transform_indices = @transform_6, window_bounds = array<i64: 1, 128>}, {transform_indices = @transform_7, window_bounds = array<i64: 256, 128>}]} {
    %c0 = arith.constant 0 : index
    %c0_0 = arith.constant 0 : index
    %0 = vector.load %arg1[%c0, %c0_0] : memref<256x32xbf16, #tpu.memory_space<vmem>>, vector<256x32xbf16>
    %c0_1 = arith.constant 0 : index
    %c0_2 = arith.constant 0 : index
    %1 = vector.load %arg2[%c0_1, %c0_2] : memref<32x128xbf16, #tpu.memory_space<vmem>>, vector<32x128xbf16>
    %cst = arith.constant dense<0.000000e+00> : vector<256x128xf32>
    %2 = tpu.matmul %0, %1, %cst {dimension_numbers = #tpu.dot_dimension_numbers<[1], [0], [0], [1], [0, 0, 1, 1], [], []>} : vector<256x32xbf16>, vector<32x128xbf16>, vector<256x128xf32> -> vector<256x128xf32>
    %c0_3 = arith.constant 0 : index
    %c0_4 = arith.constant 0 : index
    %3 = vector.load %arg3[%c0_3, %c0_4] : memref<1x128xf32, #tpu.memory_space<vmem>>, vector<1x128xf32>
    %4 = vector.broadcast %3 : vector<1x128xf32> to vector<256x128xf32>
    %5 = arith.addf %2, %4 : vector<256x128xf32>
    %cst_5 = arith.constant 0.000000e+00 : f32
    %6 = vector.broadcast %cst_5 : f32 to vector<256x128xf32>
    %7 = arith.maximumf %5, %6 : vector<256x128xf32>
    %8 = arith.truncf %7 : vector<256x128xf32> to vector<256x128xbf16>
    %c0_6 = arith.constant 0 : index
    %c0_7 = arith.constant 0 : index
    %9 = vector.load %arg4[%c0_6, %c0_7] : memref<128x256xbf16, #tpu.memory_space<vmem>>, vector<128x256xbf16>
    %cst_8 = arith.constant dense<0.000000e+00> : vector<256x256xf32>
    %10 = tpu.matmul %8, %9, %cst_8 {dimension_numbers = #tpu.dot_dimension_numbers<[1], [0], [0], [1], [0, 0, 1, 1], [], []>} : vector<256x128xbf16>, vector<128x256xbf16>, vector<256x256xf32> -> vector<256x256xf32>
    %c0_9 = arith.constant 0 : index
    %c0_10 = arith.constant 0 : index
    %11 = vector.load %arg5[%c0_9, %c0_10] : memref<1x256xf32, #tpu.memory_space<vmem>>, vector<1x256xf32>
    %12 = vector.broadcast %11 : vector<1x256xf32> to vector<256x256xf32>
    %13 = arith.addf %10, %12 : vector<256x256xf32>
    %cst_11 = arith.constant 0.000000e+00 : f32
    %14 = vector.broadcast %cst_11 : f32 to vector<256x256xf32>
    %15 = arith.maximumf %13, %14 : vector<256x256xf32>
    %16 = arith.truncf %15 : vector<256x256xf32> to vector<256x256xbf16>
    %c0_12 = arith.constant 0 : index
    %c0_13 = arith.constant 0 : index
    %17 = vector.load %arg6[%c0_12, %c0_13] : memref<256x128xbf16, #tpu.memory_space<vmem>>, vector<256x128xbf16>
    %cst_14 = arith.constant dense<0.000000e+00> : vector<256x128xf32>
    %18 = tpu.matmul %16, %17, %cst_14 {dimension_numbers = #tpu.dot_dimension_numbers<[1], [0], [0], [1], [0, 0, 1, 1], [], []>} : vector<256x256xbf16>, vector<256x128xbf16>, vector<256x128xf32> -> vector<256x128xf32>
    %c0_15 = arith.constant 0 : index
    %c0_16 = arith.constant 0 : index
    %19 = vector.load %arg7[%c0_15, %c0_16] : memref<1x128xf32, #tpu.memory_space<vmem>>, vector<1x128xf32>
    %20 = vector.broadcast %19 : vector<1x128xf32> to vector<256x128xf32>
    %21 = arith.addf %18, %20 : vector<256x128xf32>
    %22 = arith.negf %21 : vector<256x128xf32>
    %23 = math.exp %22 : vector<256x128xf32>
    %cst_17 = arith.constant 1.000000e+00 : f32
    %24 = vector.broadcast %cst_17 : f32 to vector<256x128xf32>
    %25 = arith.addf %24, %23 : vector<256x128xf32>
    %26 = arith.divf %24, %25 : vector<256x128xf32>
    %27 = arith.truncf %26 : vector<256x128xf32> to vector<256x128xbf16>
    %c0_18 = arith.constant 0 : index
    %c0_19 = arith.constant 0 : index
    %28 = vector.load %arg8[%c0_18, %c0_19] : memref<256x128xbf16, #tpu.memory_space<vmem>>, vector<256x128xbf16>
    tpu.vector_store %arg8[%c0_18, %c0_19], %27 {strides = array<i32>} : memref<256x128xbf16, #tpu.memory_space<vmem>>, vector<256x128xbf16>,
    return
  }
  func.func @transform_0(%arg0: i32) -> (i32, i32) {
    %c0_i32 = arith.constant 0 : i32
    %c0_i32_0 = arith.constant 0 : i32
    return %arg0, %c0_i32 : i32, i32
  }
  func.func @transform_1(%arg0: i32) -> (i32, i32) {
    %c0_i32 = arith.constant 0 : i32
    %c0_i32_0 = arith.constant 0 : i32
    %c0_i32_1 = arith.constant 0 : i32
    return %c0_i32, %c0_i32_0 : i32, i32
  }
  func.func @transform_2(%arg0: i32) -> (i32, i32) {
    %c0_i32 = arith.constant 0 : i32
    %c0_i32_0 = arith.constant 0 : i32
    %c0_i32_1 = arith.constant 0 : i32
    return %c0_i32, %c0_i32_0 : i32, i32
  }
  func.func @transform_3(%arg0: i32) -> (i32, i32) {
    %c0_i32 = arith.constant 0 : i32
    %c0_i32_0 = arith.constant 0 : i32
    %c0_i32_1 = arith.constant 0 : i32
    return %c0_i32, %c0_i32_0 : i32, i32
  }
  func.func @transform_4(%arg0: i32) -> (i32, i32) {
    %c0_i32 = arith.constant 0 : i32
    %c0_i32_0 = arith.constant 0 : i32
    %c0_i32_1 = arith.constant 0 : i32
    return %c0_i32, %c0_i32_0 : i32, i32
  }
  func.func @transform_5(%arg0: i32) -> (i32, i32) {
    %c0_i32 = arith.constant 0 : i32
    %c0_i32_0 = arith.constant 0 : i32
    %c0_i32_1 = arith.constant 0 : i32
    return %c0_i32, %c0_i32_0 : i32, i32
  }
  func.func @transform_6(%arg0: i32) -> (i32, i32) {
    %c0_i32 = arith.constant 0 : i32
    %c0_i32_0 = arith.constant 0 : i32
    %c0_i32_1 = arith.constant 0 : i32
    return %c0_i32, %c0_i32_0 : i32, i32
  }
  func.func @transform_7(%arg0: i32) -> (i32, i32) {
    %c0_i32 = arith.constant 0 : i32
    %c0_i32_0 = arith.constant 0 : i32
    return %arg0, %c0_i32 : i32, i32
  }
}

</mosaic_0001>

<llo_original>
// kernel: tpu_custom_call.1
$region0: #{tpu_custom_call.1}
  #allocation0 [shape = 'u32[]', space=smem, size = 0x4, offset = 0x4, fixed_abs, tag = 'smem constant byte address 0x4 - core index']
  #allocation1 [shape = 'u32[144,128]{1,0:T(1,128)}', space=vmem, size = 0x12000, scoped, tag = 'internal scratch']
  %s0 = inlined_call_operand.vmem [shape: bf16[512,32], index: 0, kind: input, shape index: {}]
  %s1 = inlined_call_operand.vmem [shape: bf16[32,128], index: 1, kind: input, shape index: {}]
  %s2 = inlined_call_operand.vmem [shape: f32[1,128], index: 2, kind: input, shape index: {}]
  %s3 = inlined_call_operand.vmem [shape: bf16[128,256], index: 3, kind: input, shape index: {}]
  %s4 = inlined_call_operand.vmem [shape: f32[1,256], index: 4, kind: input, shape index: {}]
  %s5 = inlined_call_operand.vmem [shape: bf16[256,128], index: 5, kind: input, shape index: {}]
  %s6 = inlined_call_operand.vmem [shape: f32[1,128], index: 6, kind: input, shape index: {}]
  %s7 = inlined_call_operand.hbm [shape: bf16[512,128], index: 7, kind: output, shape index: {}]
  %s8 = sld [smem:[#allocation0]]
  $region61: #{tpu_custom_call.1} parent=0
    _
  %s10 = ssub.s32 1, %s8
  %s11 = scalar_select 0, %s10, %s8
  $region1: #{tpu_custom_call.1} parent=0
    #allocation2 [shape = 'u8[131072]{0}', space=vmem, size = 0x20000, scoped, tag = 'output window, operand 0']
    #allocation3 [shape = 's32[2]{0}', space=sflag, size = 0x8, scoped, tag = 'scoped memory for tpu_custom_call.1']
    %12 = vsyncpa [#allocation3], 0
    %s13 = scalar_lea.sflag [#allocation3], 1
    %14 = vsyncpa %s13, 0
    loop: start=0, step=1, limit=4
    $region2: #{tpu_custom_call.1} parent=1 // loop_pre_header
      _
    $region3: #{tpu_custom_call.1} parent=1 // loop_header
      %s16 = sphi 0, %s20
      %p17 = scmp.ge.s32.totalorder %s16, 4
      %s26 = sphi 0, %s28
      %s29 = sphi 0, %s26
      %s30 = sphi 0, %s29
      %s46 = sphi 0, %s30
      %s50 = sphi 0, %s50
      %s52 = sphi 0, %s50
      %s53 = sphi 0, %s52
      %s67 = sphi 0, %s53
      %s71 = sphi 0, %s71
      %s73 = sphi 0, %s71
      %s74 = sphi 0, %s73
      %s88 = sphi 0, %s74
      %s92 = sphi 0, %s92
      %s94 = sphi 0, %s92
      %s95 = sphi 0, %s94
      %s109 = sphi 0, %s95
      %s113 = sphi 0, %s113
      %s115 = sphi 0, %s113
      %s116 = sphi 0, %s115
      %s130 = sphi 0, %s116
      %s134 = sphi 0, %s134
      %s136 = sphi 0, %s134
      %s137 = sphi 0, %s136
      %s151 = sphi 0, %s137
      %s155 = sphi 0, %s155
      %s157 = sphi 0, %s155
      %s158 = sphi 0, %s157
      %s172 = sphi 0, %s158
      %s178 = sphi 0, %s180
      %s181 = sphi 0, %s178
      %s182 = sphi 0, %s181
      %s198 = sphi 0, %s182
    $region4: #{tpu_custom_call.1} parent=1 // loop_header_branch
      %19 = sbr.rel (%p17) target = $region8
    $region5: #{tpu_custom_call.1} parent=1 // loop_body
      %s21 = ssub.s32 %s16, 1
      %s22 = ssub.s32 %s16, 2
      %s23 = sadd.s32 %s16, 1
      %s24 = ssub.s32 %s16, %s23
      %p25 = scmp.eq.s32.totalorder %s24, 0
      %s27 = sadd.s32 %s26, 1
      %s28 = scalar_select %p25, %s26, %s27
      %p31 = pneg %p25
      %p32 = scmp.eq.s32.totalorder %s16, 1
      %p33 = por %p31, %p32
      %p34 = scmp.ne.s32.totalorder %s26, %s29
      %p35 = scmp.eq.s32.totalorder %s16, 0
      %p36 = por %p34, %p35
      %p37 = scmp.ne.s32.totalorder %s26, %s29
      %p38 = scmp.eq.s32.totalorder %s21, 1
      %p39 = por %p37, %p38
      %p40 = scmp.ne.s32.totalorder %s29, %s30
      %p41 = scmp.eq.s32.totalorder %s21, 0
      %p42 = por %p40, %p41
      %p43 = scmp.ne.s32.totalorder %s29, %s30
      %p44 = scmp.eq.s32.totalorder %s22, 1
      %p45 = por %p43, %p44
      %p47 = scmp.ne.s32.totalorder %s30, %s46
      %p48 = scmp.eq.s32.totalorder %s22, 0
      %p49 = por %p47, %p48
      %s51 = sadd.s32 %s50, 1
      %p54 = scmp.eq.s32.totalorder %s16, 1
      %p55 = scmp.ne.s32.totalorder %s50, %s52
      %p56 = scmp.eq.s32.totalorder %s16, 0
      %p57 = por %p55, %p56
      %p58 = scmp.ne.s32.totalorder %s50, %s52
      %p59 = scmp.eq.s32.totalorder %s21, 1
      %p60 = por %p58, %p59
      %p61 = scmp.ne.s32.totalorder %s52, %s53
      %p62 = scmp.eq.s32.totalorder %s21, 0
      %p63 = por %p61, %p62
      %p64 = scmp.ne.s32.totalorder %s52, %s53
      %p65 = scmp.eq.s32.totalorder %s22, 1
      %p66 = por %p64, %p65
      %p68 = scmp.ne.s32.totalorder %s53, %s67
      %p69 = scmp.eq.s32.totalorder %s22, 0
      %p70 = por %p68, %p69
      %s72 = sadd.s32 %s71, 1
      %p75 = scmp.eq.s32.totalorder %s16, 1
      %p76 = scmp.ne.s32.totalorder %s71, %s73
      %p77 = scmp.eq.s32.totalorder %s16, 0
      %p78 = por %p76, %p77
      %p79 = scmp.ne.s32.totalorder %s71, %s73
      %p80 = scmp.eq.s32.totalorder %s21, 1
      %p81 = por %p79, %p80
      %p82 = scmp.ne.s32.totalorder %s73, %s74
      %p83 = scmp.eq.s32.totalorder %s21, 0
      %p84 = por %p82, %p83
      %p85 = scmp.ne.s32.totalorder %s73, %s74
      %p86 = scmp.eq.s32.totalorder %s22, 1
      %p87 = por %p85, %p86
      %p89 = scmp.ne.s32.totalorder %s74, %s88
      %p90 = scmp.eq.s32.totalorder %s22, 0
      %p91 = por %p89, %p90
      %s93 = sadd.s32 %s92, 1
      %p96 = scmp.eq.s32.totalorder %s16, 1
      %p97 = scmp.ne.s32.totalorder %s92, %s94
      %p98 = scmp.eq.s32.totalorder %s16, 0
      %p99 = por %p97, %p98
      %p100 = scmp.ne.s32.totalorder %s92, %s94
      %p101 = scmp.eq.s32.totalorder %s21, 1
      %p102 = por %p100, %p101
      %p103 = scmp.ne.s32.totalorder %s94, %s95
      %p104 = scmp.eq.s32.totalorder %s21, 0
      %p105 = por %p103, %p104
      %p106 = scmp.ne.s32.totalorder %s94, %s95
      %p107 = scmp.eq.s32.totalorder %s22, 1
      %p108 = por %p106, %p107
      %p110 = scmp.ne.s32.totalorder %s95, %s109
      %p111 = scmp.eq.s32.totalorder %s22, 0
      %p112 = por %p110, %p111
      %s114 = sadd.s32 %s113, 1
      %p117 = scmp.eq.s32.totalorder %s16, 1
      %p118 = scmp.ne.s32.totalorder %s113, %s115
      %p119 = scmp.eq.s32.totalorder %s16, 0
      %p120 = por %p118, %p119
      %p121 = scmp.ne.s32.totalorder %s113, %s115
      %p122 = scmp.eq.s32.totalorder %s21, 1
      %p123 = por %p121, %p122
      %p124 = scmp.ne.s32.totalorder %s115, %s116
      %p125 = scmp.eq.s32.totalorder %s21, 0
      %p126 = por %p124, %p125
      %p127 = scmp.ne.s32.totalorder %s115, %s116
      %p128 = scmp.eq.s32.totalorder %s22, 1
      %p129 = por %p127, %p128
      %p131 = scmp.ne.s32.totalorder %s116, %s130
      %p132 = scmp.eq.s32.totalorder %s22, 0
      %p133 = por %p131, %p132
      %s135 = sadd.s32 %s134, 1
      %p138 = scmp.eq.s32.totalorder %s16, 1
      %p139 = scmp.ne.s32.totalorder %s134, %s136
      %p140 = scmp.eq.s32.totalorder %s16, 0
      %p141 = por %p139, %p140
      %p142 = scmp.ne.s32.totalorder %s134, %s136
      %p143 = scmp.eq.s32.totalorder %s21, 1
      %p144 = por %p142, %p143
      %p145 = scmp.ne.s32.totalorder %s136, %s137
      %p146 = scmp.eq.s32.totalorder %s21, 0
      %p147 = por %p145, %p146
      %p148 = scmp.ne.s32.totalorder %s136, %s137
      %p149 = scmp.eq.s32.totalorder %s22, 1
      %p150 = por %p148, %p149
      %p152 = scmp.ne.s32.totalorder %s137, %s151
      %p153 = scmp.eq.s32.totalorder %s22, 0
      %p154 = por %p152, %p153
      %s156 = sadd.s32 %s155, 1
      %p159 = scmp.eq.s32.totalorder %s16, 1
      %p160 = scmp.ne.s32.totalorder %s155, %s157
      %p161 = scmp.eq.s32.totalorder %s16, 0
      %p162 = por %p160, %p161
      %p163 = scmp.ne.s32.totalorder %s155, %s157
      %p164 = scmp.eq.s32.totalorder %s21, 1
      %p165 = por %p163, %p164
      %p166 = scmp.ne.s32.totalorder %s157, %s158
      %p167 = scmp.eq.s32.totalorder %s21, 0
      %p168 = por %p166, %p167
      %p169 = scmp.ne.s32.totalorder %s157, %s158
      %p170 = scmp.eq.s32.totalorder %s22, 1
      %p171 = por %p169, %p170
      %p173 = scmp.ne.s32.totalorder %s158, %s172
      %p174 = scmp.eq.s32.totalorder %s22, 0
      %p175 = por %p173, %p174
      %s176 = ssub.s32 %s16, %s23
      %p177 = scmp.eq.s32.totalorder %s176, 0
      %s179 = sadd.s32 %s178, 1
      %s180 = scalar_select %p177, %s178, %s179
      %p183 = pneg %p177
      %p184 = scmp.eq.s32.totalorder %s16, 1
      %p185 = por %p183, %p184
      %p186 = scmp.ne.s32.totalorder %s178, %s181
      %p187 = scmp.eq.s32.totalorder %s16, 0
      %p188 = por %p186, %p187
      %p189 = scmp.ne.s32.totalorder %s178, %s181
      %p190 = scmp.eq.s32.totalorder %s21, 1
      %p191 = por %p189, %p190
      %p192 = scmp.ne.s32.totalorder %s181, %s182
      %p193 = scmp.eq.s32.totalorder %s21, 0
      %p194 = por %p192, %p193
      %p195 = scmp.ne.s32.totalorder %s181, %s182
      %p196 = scmp.eq.s32.totalorder %s22, 1
      %p197 = por %p195, %p196
      %p199 = scmp.ne.s32.totalorder %s182, %s198
      %p200 = scmp.eq.s32.totalorder %s22, 0
      %p201 = por %p199, %p200
      %p202 = scmp.le.s32.totalorder 1, %s16
      %p203 = scmp.lt.s32.totalorder %s16, 3
      %p204 = pnand %p202, %p203
      %p205 = pneg %p204
      // Predicated region
      $region9: #{tpu_custom_call.1} parent=5 // pred_check
        _
      $region10: #{tpu_custom_call.1} parent=5 // pred_check_branch
        %207 = sbr.rel (%p204) target = $region12
      $region11: #{tpu_custom_call.1} parent=5 // pred_region
        %s208 = ssub.s32 %s16, 1
        // Predicated region
        $region13: #{tpu_custom_call.1} parent=11 // pred_check
          %p209 = pneg %p63
        $region14: #{tpu_custom_call.1} parent=11 // pred_check_branch
          %211 = sbr.rel (%p209) target = $region16
        $region15: #{tpu_custom_call.1} parent=11 // pred_region
          _
        $region16: #{tpu_custom_call.1} parent=11 // pred_fallthru
          _
        // Predicated region
        $region17: #{tpu_custom_call.1} parent=11 // pred_check
          %p212 = pneg %p84
        $region18: #{tpu_custom_call.1} parent=11 // pred_check_branch
          %214 = sbr.rel (%p212) target = $region20
        $region19: #{tpu_custom_call.1} parent=11 // pred_region
          _
        $region20: #{tpu_custom_call.1} parent=11 // pred_fallthru
          _
        // Predicated region
        $region21: #{tpu_custom_call.1} parent=11 // pred_check
          %p215 = pneg %p105
        $region22: #{tpu_custom_call.1} parent=11 // pred_check_branch
          %217 = sbr.rel (%p215) target = $region24
        $region23: #{tpu_custom_call.1} parent=11 // pred_region
          _
        $region24: #{tpu_custom_call.1} parent=11 // pred_fallthru
          _
        // Predicated region
        $region25: #{tpu_custom_call.1} parent=11 // pred_check
          %p218 = pneg %p126
        $region26: #{tpu_custom_call.1} parent=11 // pred_check_branch
          %220 = sbr.rel (%p218) target = $region28
        $region27: #{tpu_custom_call.1} parent=11 // pred_region
          _
        $region28: #{tpu_custom_call.1} parent=11 // pred_fallthru
          _
        // Predicated region
        $region29: #{tpu_custom_call.1} parent=11 // pred_check
          %p221 = pneg %p147
        $region30: #{tpu_custom_call.1} parent=11 // pred_check_branch
          %223 = sbr.rel (%p221) target = $region32
        $region31: #{tpu_custom_call.1} parent=11 // pred_region
          _
        $region32: #{tpu_custom_call.1} parent=11 // pred_fallthru
          _
        // Predicated region
        $region33: #{tpu_custom_call.1} parent=11 // pred_check
          %p224 = pneg %p168
        $region34: #{tpu_custom_call.1} parent=11 // pred_check_branch
          %226 = sbr.rel (%p224) target = $region36
        $region35: #{tpu_custom_call.1} parent=11 // pred_region
          _
        $region36: #{tpu_custom_call.1} parent=11 // pred_fallthru
          _
      $region12: #{tpu_custom_call.1} parent=5 // pred_fallthru
        _
      %p227 = scmp.lt.s32.totalorder %s16, 2
      // Predicated region
      $region37: #{tpu_custom_call.1} parent=5 // pred_check
        %p228 = pneg %p227
      $region38: #{tpu_custom_call.1} parent=5 // pred_check_branch
        %230 = sbr.rel (%p228) target = $region40
      $region39: #{tpu_custom_call.1} parent=5 // pred_region
        // Predicated region
        $region41: #{tpu_custom_call.1} parent=39 // pred_check
          %p231 = pneg %p36
        $region42: #{tpu_custom_call.1} parent=39 // pred_check_branch
          %233 = sbr.rel (%p231) target = $region44
        $region43: #{tpu_custom_call.1} parent=39 // pred_region
          %s234 = smul.u32 32, %s16
          %p235 = scmp.lt.s32.totalorder %s234, 63
          %s236 = scalar_select %p235, %s234, 63
          %s237 = smul.addr %s236, 4
          %s238 = scalar_lea.vmem %s0, %s237
          %s239 = smul.u32 32, %s16
        $region44: #{tpu_custom_call.1} parent=39 // pred_fallthru
          _
      $region40: #{tpu_custom_call.1} parent=5 // pred_fallthru
        _
      %p240 = scmp.le.s32.totalorder 1, %s16
      %p241 = scmp.lt.s32.totalorder %s16, 3
      %p242 = pnand %p240, %p241
      %p243 = pneg %p242
      // Predicated region
      $region45: #{tpu_custom_call.1} parent=5 // pred_check
        _
      $region46: #{tpu_custom_call.1} parent=5 // pred_check_branch
        %245 = sbr.rel (%p242) target = $region48
      $region47: #{tpu_custom_call.1} parent=5 // pred_region
        %s246 = ssub.s32 %s16, 1
        %s247 = smul.u32 32, %s21
        %p248 = scmp.lt.s32.totalorder %s247, 63
        %s249 = scalar_select %p248, %s247, 63
        %s250 = smul.addr %s249, 4
        %s251 = scalar_lea.vmem %s0, %s250
        %p252 = pneg %p42
        %p253 = pneg %p39
        %p254 = pneg %p63
        %p255 = pneg %p60
        %p256 = pneg %p84
        %p257 = pneg %p81
        %p258 = pneg %p105
        %p259 = pneg %p102
        %p260 = pneg %p126
        %p261 = pneg %p123
        %p262 = pneg %p147
        %p263 = pneg %p144
        %p264 = pneg %p168
        %p265 = pneg %p165
        %p266 = pneg %p194
        %p267 = pneg %p191
        %s268 = sand.u32 %s181, 1
        %s269 = scalar_lea.sflag [#allocation3], %s268
        %s270 = sand.u32 %s181, 1
        %s271 = smul.addr %s270, 128
        %s272 = scalar_lea.vmem [#allocation2], %s271
        %s273 = smul.u32 32, %s21
        %p274 = scmp.lt.s32.totalorder %s273, 63
        %s275 = scalar_select %p274, %s273, 63
        %s276 = smul.addr %s275, 4
        %s277 = scalar_lea.vmem %s0, %s276
        %s278 = smul.u32 32, %s21
        %s279 = smul.u32 32, %s21
        %v281 = vld [vmem:[%s277] sm:$0xf]
        %v282 = vld [vmem:[%s277 + $0x4] sm:$0xf]
        %v283 = vld [vmem:[%s277 + $0x8] sm:$0xf]
        %v284 = vld [vmem:[%s277 + $0xc] sm:$0xf]
        %v285 = vld [vmem:[%s277 + $0x10] sm:$0xf]
        %v286 = vld [vmem:[%s277 + $0x14] sm:$0xf]
        %v287 = vld [vmem:[%s277 + $0x18] sm:$0xf]
        %v288 = vld [vmem:[%s277 + $0x1c] sm:$0xf]
        %v289 = vld [vmem:[%s277 + $0x20] sm:$0xf]
        %v290 = vld [vmem:[%s277 + $0x24] sm:$0xf]
        %v291 = vld [vmem:[%s277 + $0x28] sm:$0xf]
        %v292 = vld [vmem:[%s277 + $0x2c] sm:$0xf]
        %v293 = vld [vmem:[%s277 + $0x30] sm:$0xf]
        %v294 = vld [vmem:[%s277 + $0x34] sm:$0xf]
        %v295 = vld [vmem:[%s277 + $0x38] sm:$0xf]
        %v296 = vld [vmem:[%s277 + $0x3c] sm:$0xf]
        %v297 = vld [vmem:[%s277 + $0x40] sm:$0xf]
        %v298 = vld [vmem:[%s277 + $0x44] sm:$0xf]
        %v299 = vld [vmem:[%s277 + $0x48] sm:$0xf]
        %v300 = vld [vmem:[%s277 + $0x4c] sm:$0xf]
        %v301 = vld [vmem:[%s277 + $0x50] sm:$0xf]
        %v302 = vld [vmem:[%s277 + $0x54] sm:$0xf]
        %v303 = vld [vmem:[%s277 + $0x58] sm:$0xf]
        %v304 = vld [vmem:[%s277 + $0x5c] sm:$0xf]
        %v305 = vld [vmem:[%s277 + $0x60] sm:$0xf]
        %v306 = vld [vmem:[%s277 + $0x64] sm:$0xf]
        %v307 = vld [vmem:[%s277 + $0x68] sm:$0xf]
        %v308 = vld [vmem:[%s277 + $0x6c] sm:$0xf]
        %v309 = vld [vmem:[%s277 + $0x70] sm:$0xf]
        %v310 = vld [vmem:[%s277 + $0x74] sm:$0xf]
        %v311 = vld [vmem:[%s277 + $0x78] sm:$0xf]
        %v312 = vld [vmem:[%s277 + $0x7c] sm:$0xf]
        %v313 = vld [vmem:[%s1] sm:$0xf]
        %v314 = vld [vmem:[%s1 + $0x4] sm:$0xf]
        %v315 = vld [vmem:[%s1 + $0x8] sm:$0xf]
        %v316 = vld [vmem:[%s1 + $0xc] sm:$0xf]
        %v317 = vld [vmem:[%s2] sm:$0x1]
        %v319 = vlaneseq
        %v320 = vshrl.u32 %v319, 7
        %v321 = vsub.s32 0, %v320
        %v322 = vrot.slane %v317, %v321
        %v356 = vunpack.c.l.b16 %v281
        %v357 = vunpack.c.l.b16 %v282
        %v358 = vunpack.c.l.b16 %v283
        %v359 = vunpack.c.l.b16 %v284
        %v360 = vunpack.c.l.b16 %v285
        %v361 = vunpack.c.l.b16 %v286
        %v362 = vunpack.c.l.b16 %v287
        %v363 = vunpack.c.l.b16 %v288
        %v364 = vunpack.c.l.b16 %v289
        %v365 = vunpack.c.l.b16 %v290
        %v366 = vunpack.c.l.b16 %v291
        %v367 = vunpack.c.l.b16 %v292
        %v368 = vunpack.c.l.b16 %v293
        %v369 = vunpack.c.l.b16 %v294
        %v370 = vunpack.c.l.b16 %v295
        %v371 = vunpack.c.l.b16 %v296
        %v372 = vunpack.c.l.b16 %v297
        %v373 = vunpack.c.l.b16 %v298
        %v374 = vunpack.c.l.b16 %v299
        %v375 = vunpack.c.l.b16 %v300
        %v376 = vunpack.c.l.b16 %v301
        %v377 = vunpack.c.l.b16 %v302
        %v378 = vunpack.c.l.b16 %v303
        %v379 = vunpack.c.l.b16 %v304
        %v380 = vunpack.c.l.b16 %v305
        %v381 = vunpack.c.l.b16 %v306
        %v382 = vunpack.c.l.b16 %v307
        %v383 = vunpack.c.l.b16 %v308
        %v384 = vunpack.c.l.b16 %v309
        %v385 = vunpack.c.l.b16 %v310
        %v386 = vunpack.c.l.b16 %v311
        %v387 = vunpack.c.l.b16 %v312
        %v388 = vpack.c.b16 %v357, %v356
        %v389 = vpack.c.b16 %v359, %v358
        %v390 = vpack.c.b16 %v361, %v360
        %v391 = vpack.c.b16 %v363, %v362
        %v392 = vpack.c.b16 %v365, %v364
        %v393 = vpack.c.b16 %v367, %v366
        %v394 = vpack.c.b16 %v369, %v368
        %v395 = vpack.c.b16 %v371, %v370
        %v396 = vpack.c.b16 %v373, %v372
        %v397 = vpack.c.b16 %v375, %v374
        %v398 = vpack.c.b16 %v377, %v376
        %v399 = vpack.c.b16 %v379, %v378
        %v400 = vpack.c.b16 %v381, %v380
        %v401 = vpack.c.b16 %v383, %v382
        %v402 = vpack.c.b16 %v385, %v384
        %v403 = vpack.c.b16 %v387, %v386
        %v408 = vunpack.c.l.b16 %v313
        %v409 = vunpack.c.l.b16 %v314
        %v410 = vunpack.c.l.b16 %v315
        %v411 = vunpack.c.l.b16 %v316
        %v412 = vpack.c.b16 %v409, %v408
        %v413 = vpack.c.b16 %v411, %v410
        %vm416 = vcmask 261120
        %v418 = vsel %vm416, %v388, 0
        %v421 = vsel %vm416, %v389, 0
        %v424 = vsel %vm416, %v390, 0
        %v427 = vsel %vm416, %v391, 0
        %v430 = vsel %vm416, %v392, 0
        %v433 = vsel %vm416, %v393, 0
        %v436 = vsel %vm416, %v394, 0
        %v439 = vsel %vm416, %v395, 0
        %v442 = vsel %vm416, %v396, 0
        %v445 = vsel %vm416, %v397, 0
        %v448 = vsel %vm416, %v398, 0
        %v451 = vsel %vm416, %v399, 0
        %v454 = vsel %vm416, %v400, 0
        %v457 = vsel %vm416, %v401, 0
        %v460 = vsel %vm416, %v402, 0
        %v463 = vsel %vm416, %v403, 0
        %465 = vmatprep.subr.bf16.mxu0 0
        %466 = vmatpush1.bf16.msra.mxu0 %v412
        %467 = vmatprep.subr.bf16.mxu0 0
        %468 = vmatpush1.bf16.msra.mxu0 %v413
        %469 = vmatprep.subr.bf16.mxu0 0
        %470 = vmatpush1.bf16.msra.mxu0 0
        %471 = vmatprep.subr.bf16.mxu0 0
        %472 = vmatpush1.bf16.msra.mxu0 0
        %473 = vmatprep.subr.bf16.mxu0 0
        %474 = vmatpush1.bf16.msra.mxu0 0
        %475 = vmatprep.subr.bf16.mxu0 0
        %476 = vmatpush1.bf16.msra.mxu0 0
        %477 = vmatprep.subr.bf16.mxu0 0
        %478 = vmatpush1.bf16.msra.mxu0 0
        %479 = vmatprep.subr.bf16.mxu0 0
        %480 = vmatpush1.bf16.msra.mxu0 0
        %481 = vmatprep.subr.bf16.mxu0 0
        %482 = vmatpush1.bf16.msra.mxu0 0
        %483 = vmatprep.subr.bf16.mxu0 0
        %484 = vmatpush1.bf16.msra.mxu0 0
        %485 = vmatprep.subr.bf16.mxu0 0
        %486 = vmatpush1.bf16.msra.mxu0 0
        %487 = vmatprep.subr.bf16.mxu0 0
        %488 = vmatpush1.bf16.msra.mxu0 0
        %489 = vmatprep.subr.bf16.mxu0 0
        %490 = vmatpush1.bf16.msra.mxu0 0
        %491 = vmatprep.subr.bf16.mxu0 0
        %492 = vmatpush1.bf16.msra.mxu0 0
        %493 = vmatprep.subr.bf16.mxu0 0
        %494 = vmatpush1.bf16.msra.mxu0 0
        %495 = vmatprep.subr.bf16.mxu0 0
        %496 = vmatpush1.bf16.msra.mxu0 0
        %497 = vmatprep.mubr.bf16.mxu0 0
        %498 = vmatmul.mubr.bf16.gmra.mrb[0].mxu0 %v418
        %v499 = vpop.f32.mrb[0].mxu0
        %v500 = vadd.f32 %v322, %v499
        %v501 = vpop.f32.mrb[0].mxu0
        %v502 = vpop.f32.mrb[0].mxu0
        %v503 = vadd.f32 %v322, %v502
        %v504 = vpop.f32.mrb[0].mxu0
        %505 = vmatprep.mubr.bf16.mxu0 0
        %506 = vmatmul.mubr.bf16.gmra.mrb[0].mxu0 %v421
        %v507 = vpop.f32.mrb[0].mxu0
        %v508 = vadd.f32 %v322, %v507
        %v509 = vpop.f32.mrb[0].mxu0
        %v510 = vpop.f32.mrb[0].mxu0
        %v511 = vadd.f32 %v322, %v510
        %v512 = vpop.f32.mrb[0].mxu0
        %513 = vmatprep.mubr.bf16.mxu0 0
        %514 = vmatmul.mubr.bf16.gmra.mrb[0].mxu0 %v424
        %v515 = vpop.f32.mrb[0].mxu0
        %v516 = vadd.f32 %v322, %v515
        %v517 = vpop.f32.mrb[0].mxu0
        %v518 = vpop.f32.mrb[0].mxu0
        %v519 = vadd.f32 %v322, %v518
        %v520 = vpop.f32.mrb[0].mxu0
        %521 = vmatprep.mubr.bf16.mxu0 0
        %522 = vmatmul.mubr.bf16.gmra.mrb[0].mxu0 %v427
        %v523 = vpop.f32.mrb[0].mxu0
        %v524 = vadd.f32 %v322, %v523
        %v525 = vpop.f32.mrb[0].mxu0
        %v526 = vpop.f32.mrb[0].mxu0
        %v527 = vadd.f32 %v322, %v526
        %v528 = vpop.f32.mrb[0].mxu0
        %529 = vmatprep.mubr.bf16.mxu0 0
        %530 = vmatmul.mubr.bf16.gmra.mrb[0].mxu0 %v430
        %v531 = vpop.f32.mrb[0].mxu0
        %v532 = vadd.f32 %v322, %v531
        %v533 = vpop.f32.mrb[0].mxu0
        %v534 = vpop.f32.mrb[0].mxu0
        %v535 = vadd.f32 %v322, %v534
        %v536 = vpop.f32.mrb[0].mxu0
        %537 = vmatprep.mubr.bf16.mxu0 0
        %538 = vmatmul.mubr.bf16.gmra.mrb[0].mxu0 %v433
        %v539 = vpop.f32.mrb[0].mxu0
        %v540 = vadd.f32 %v322, %v539
        %v541 = vpop.f32.mrb[0].mxu0
        %v542 = vpop.f32.mrb[0].mxu0
        %v543 = vadd.f32 %v322, %v542
        %v544 = vpop.f32.mrb[0].mxu0
        %545 = vmatprep.mubr.bf16.mxu0 0
        %546 = vmatmul.mubr.bf16.gmra.mrb[0].mxu0 %v436
        %v547 = vpop.f32.mrb[0].mxu0
        %v548 = vadd.f32 %v322, %v547
        %v549 = vpop.f32.mrb[0].mxu0
        %v550 = vpop.f32.mrb[0].mxu0
        %v551 = vadd.f32 %v322, %v550
        %v552 = vpop.f32.mrb[0].mxu0
        %553 = vmatprep.mubr.bf16.mxu0 0
        %554 = vmatmul.mubr.bf16.gmra.mrb[0].mxu0 %v439
        %v555 = vpop.f32.mrb[0].mxu0
        %v556 = vadd.f32 %v322, %v555
        %v557 = vpop.f32.mrb[0].mxu0
        %v558 = vpop.f32.mrb[0].mxu0
        %v559 = vadd.f32 %v322, %v558
        %v560 = vpop.f32.mrb[0].mxu0
        %561 = vmatprep.mubr.bf16.mxu0 0
        %562 = vmatmul.mubr.bf16.gmra.mrb[0].mxu0 %v442
        %v563 = vpop.f32.mrb[0].mxu0
        %v564 = vadd.f32 %v322, %v563
        %v565 = vpop.f32.mrb[0].mxu0
        %v566 = vpop.f32.mrb[0].mxu0
        %v567 = vadd.f32 %v322, %v566
        %v568 = vpop.f32.mrb[0].mxu0
        %569 = vmatprep.mubr.bf16.mxu0 0
        %570 = vmatmul.mubr.bf16.gmra.mrb[0].mxu0 %v445
        %v571 = vpop.f32.mrb[0].mxu0
        %v572 = vadd.f32 %v322, %v571
        %v573 = vpop.f32.mrb[0].mxu0
        %v574 = vpop.f32.mrb[0].mxu0
        %v575 = vadd.f32 %v322, %v574
        %v576 = vpop.f32.mrb[0].mxu0
        %577 = vmatprep.mubr.bf16.mxu0 0
        %578 = vmatmul.mubr.bf16.gmra.mrb[0].mxu0 %v448
        %v579 = vpop.f32.mrb[0].mxu0
        %v580 = vadd.f32 %v322, %v579
        %v581 = vpop.f32.mrb[0].mxu0
        %v582 = vpop.f32.mrb[0].mxu0
        %v583 = vadd.f32 %v322, %v582
        %v584 = vpop.f32.mrb[0].mxu0
        %585 = vmatprep.mubr.bf16.mxu0 0
        %586 = vmatmul.mubr.bf16.gmra.mrb[0].mxu0 %v451
        %v587 = vpop.f32.mrb[0].mxu0
        %v588 = vadd.f32 %v322, %v587
        %v589 = vpop.f32.mrb[0].mxu0
        %v590 = vpop.f32.mrb[0].mxu0
        %v591 = vadd.f32 %v322, %v590
        %v592 = vpop.f32.mrb[0].mxu0
        %593 = vmatprep.mubr.bf16.mxu0 0
        %594 = vmatmul.mubr.bf16.gmra.mrb[0].mxu0 %v454
        %v595 = vpop.f32.mrb[0].mxu0
        %v596 = vadd.f32 %v322, %v595
        %v597 = vpop.f32.mrb[0].mxu0
        %v598 = vpop.f32.mrb[0].mxu0
        %v599 = vadd.f32 %v322, %v598
        %v600 = vpop.f32.mrb[0].mxu0
        %601 = vmatprep.mubr.bf16.mxu0 0
        %602 = vmatmul.mubr.bf16.gmra.mrb[0].mxu0 %v457
        %v603 = vpop.f32.mrb[0].mxu0
        %v604 = vadd.f32 %v322, %v603
        %v605 = vpop.f32.mrb[0].mxu0
        %v606 = vpop.f32.mrb[0].mxu0
        %v607 = vadd.f32 %v322, %v606
        %v608 = vpop.f32.mrb[0].mxu0
        %609 = vmatprep.mubr.bf16.mxu0 0
        %610 = vmatmul.mubr.bf16.gmra.mrb[0].mxu0 %v460
        %v611 = vpop.f32.mrb[0].mxu0
        %v612 = vadd.f32 %v322, %v611
        %v613 = vpop.f32.mrb[0].mxu0
        %v614 = vpop.f32.mrb[0].mxu0
        %v615 = vadd.f32 %v322, %v614
        %v616 = vpop.f32.mrb[0].mxu0
        %617 = vmatprep.mubr.bf16.mxu0 0
        %618 = vmatmul.mubr.bf16.gmra.mrb[0].mxu0 %v463
        %v619 = vpop.f32.mrb[0].mxu0
        %v620 = vadd.f32 %v322, %v619
        %v621 = vpop.f32.mrb[0].mxu0
        %v622 = vpop.f32.mrb[0].mxu0
        %v623 = vadd.f32 %v322, %v622
        %v624 = vpop.f32.mrb[0].mxu0
        %625 = vdwg.mxu0
        %v626 = vmax.f32 %v500, 0.0
        %v627 = vmax.f32 %v503, 0.0
        %v628 = vmax.f32 %v508, 0.0
        %v629 = vmax.f32 %v511, 0.0
        %v630 = vmax.f32 %v516, 0.0
        %v631 = vmax.f32 %v519, 0.0
        %v632 = vmax.f32 %v524, 0.0
        %v633 = vmax.f32 %v527, 0.0
        %v634 = vmax.f32 %v532, 0.0
        %v635 = vmax.f32 %v535, 0.0
        %v636 = vmax.f32 %v540, 0.0
        %v637 = vmax.f32 %v543, 0.0
        %v638 = vmax.f32 %v548, 0.0
        %v639 = vmax.f32 %v551, 0.0
        %v640 = vmax.f32 %v556, 0.0
        %v641 = vmax.f32 %v559, 0.0
        %v642 = vmax.f32 %v564, 0.0
        %v643 = vmax.f32 %v567, 0.0
        %v644 = vmax.f32 %v572, 0.0
        %v645 = vmax.f32 %v575, 0.0
        %v646 = vmax.f32 %v580, 0.0
        %v647 = vmax.f32 %v583, 0.0
        %v648 = vmax.f32 %v588, 0.0
        %v649 = vmax.f32 %v591, 0.0
        %v650 = vmax.f32 %v596, 0.0
        %v651 = vmax.f32 %v599, 0.0
        %v652 = vmax.f32 %v604, 0.0
        %v653 = vmax.f32 %v607, 0.0
        %v654 = vmax.f32 %v612, 0.0
        %v655 = vmax.f32 %v615, 0.0
        %v656 = vmax.f32 %v620, 0.0
        %v657 = vmax.f32 %v623, 0.0
        %v658 = vpack.c.bf16 %v627, %v626
        %v659 = vpack.c.bf16 %v629, %v628
        %v660 = vpack.c.bf16 %v631, %v630
        %v661 = vpack.c.bf16 %v633, %v632
        %v662 = vpack.c.bf16 %v635, %v634
        %v663 = vpack.c.bf16 %v637, %v636
        %v664 = vpack.c.bf16 %v639, %v638
        %v665 = vpack.c.bf16 %v641, %v640
        %v666 = vpack.c.bf16 %v643, %v642
        %v667 = vpack.c.bf16 %v645, %v644
        %v668 = vpack.c.bf16 %v647, %v646
        %v669 = vpack.c.bf16 %v649, %v648
        %v670 = vpack.c.bf16 %v651, %v650
        %v671 = vpack.c.bf16 %v653, %v652
        %v672 = vpack.c.bf16 %v655, %v654
        %v673 = vpack.c.bf16 %v657, %v656
        %v674 = vld [vmem:[%s3] sm:$0xff]
        %v675 = vld [vmem:[%s3 + $0x8] sm:$0xff]
        %v676 = vld [vmem:[%s3 + $0x10] sm:$0xff]
        %v677 = vld [vmem:[%s3 + $0x18] sm:$0xff]
        %v678 = vld [vmem:[%s3 + $0x20] sm:$0xff]
        %v679 = vld [vmem:[%s3 + $0x28] sm:$0xff]
        %v680 = vld [vmem:[%s3 + $0x30] sm:$0xff]
        %v681 = vld [vmem:[%s3 + $0x38] sm:$0xff]
        %v682 = vld [vmem:[%s3 + $0x40] sm:$0xff]
        %v683 = vld [vmem:[%s3 + $0x48] sm:$0xff]
        %v684 = vld [vmem:[%s3 + $0x50] sm:$0xff]
        %v685 = vld [vmem:[%s3 + $0x58] sm:$0xff]
        %v686 = vld [vmem:[%s3 + $0x60] sm:$0xff]
        %v687 = vld [vmem:[%s3 + $0x68] sm:$0xff]
        %v688 = vld [vmem:[%s3 + $0x70] sm:$0xff]
        %v689 = vld [vmem:[%s3 + $0x78] sm:$0xff]
        %v690 = vld [vmem:[%s4] sm:$0x3]
        %v692 = vlaneseq
        %v693 = vshrl.u32 %v692, 7
        %v694 = vsub.s32 0, %v693
        %v695 = vrot.slane %v690, %v694
        %v696 = vlaneseq
        %v697 = vshrl.u32 %v696, 7
        %v698 = vsub.s32 1, %v697
        %v699 = vrot.slane %v690, %v698
        %v718 = vunpack.c.l.b16 %v674
        %v719 = vunpack.c.h.b16 %v674
        %v720 = vunpack.c.l.b16 %v675
        %v721 = vunpack.c.h.b16 %v675
        %v722 = vunpack.c.l.b16 %v676
        %v723 = vunpack.c.h.b16 %v676
        %v724 = vunpack.c.l.b16 %v677
        %v725 = vunpack.c.h.b16 %v677
        %v726 = vunpack.c.l.b16 %v678
        %v727 = vunpack.c.h.b16 %v678
        %v728 = vunpack.c.l.b16 %v679
        %v729 = vunpack.c.h.b16 %v679
        %v730 = vunpack.c.l.b16 %v680
        %v731 = vunpack.c.h.b16 %v680
        %v732 = vunpack.c.l.b16 %v681
        %v733 = vunpack.c.h.b16 %v681
        %v734 = vunpack.c.l.b16 %v682
        %v735 = vunpack.c.h.b16 %v682
        %v736 = vunpack.c.l.b16 %v683
        %v737 = vunpack.c.h.b16 %v683
        %v738 = vunpack.c.l.b16 %v684
        %v739 = vunpack.c.h.b16 %v684
        %v740 = vunpack.c.l.b16 %v685
        %v741 = vunpack.c.h.b16 %v685
        %v742 = vunpack.c.l.b16 %v686
        %v743 = vunpack.c.h.b16 %v686
        %v744 = vunpack.c.l.b16 %v687
        %v745 = vunpack.c.h.b16 %v687
        %v746 = vunpack.c.l.b16 %v688
        %v747 = vunpack.c.h.b16 %v688
        %v748 = vunpack.c.l.b16 %v689
        %v749 = vunpack.c.h.b16 %v689
        %v750 = vpack.c.b16 %v720, %v718
        %v751 = vpack.c.b16 %v721, %v719
        %v752 = vpack.c.b16 %v724, %v722
        %v753 = vpack.c.b16 %v725, %v723
        %v754 = vpack.c.b16 %v728, %v726
        %v755 = vpack.c.b16 %v729, %v727
        %v756 = vpack.c.b16 %v732, %v730
        %v757 = vpack.c.b16 %v733, %v731
        %v758 = vpack.c.b16 %v736, %v734
        %v759 = vpack.c.b16 %v737, %v735
        %v760 = vpack.c.b16 %v740, %v738
        %v761 = vpack.c.b16 %v741, %v739
        %v762 = vpack.c.b16 %v744, %v742
        %v763 = vpack.c.b16 %v745, %v743
        %v764 = vpack.c.b16 %v748, %v746
        %v765 = vpack.c.b16 %v749, %v747
        %782 = vmatprep.subr.bf16.mxu0 %v751
        %783 = vmatpush1.bf16.msra.mxu0 %v750
        %784 = vmatprep.subr.bf16.mxu0 %v753
        %785 = vmatpush1.bf16.msra.mxu0 %v752
        %786 = vmatprep.subr.bf16.mxu0 %v755
        %787 = vmatpush1.bf16.msra.mxu0 %v754
        %788 = vmatprep.subr.bf16.mxu0 %v757
        %789 = vmatpush1.bf16.msra.mxu0 %v756
        %790 = vmatprep.subr.bf16.mxu0 %v759
        %791 = vmatpush1.bf16.msra.mxu0 %v758
        %792 = vmatprep.subr.bf16.mxu0 %v761
        %793 = vmatpush1.bf16.msra.mxu0 %v760
        %794 = vmatprep.subr.bf16.mxu0 %v763
        %795 = vmatpush1.bf16.msra.mxu0 %v762
        %796 = vmatprep.subr.bf16.mxu0 %v765
        %797 = vmatpush1.bf16.msra.mxu0 %v764
        %798 = vmatprep.subr.bf16.mxu0 0
        %799 = vmatpush1.bf16.msra.mxu0 0
        %800 = vmatprep.subr.bf16.mxu0 0
        %801 = vmatpush1.bf16.msra.mxu0 0
        %802 = vmatprep.subr.bf16.mxu0 0
        %803 = vmatpush1.bf16.msra.mxu0 0
        %804 = vmatprep.subr.bf16.mxu0 0
        %805 = vmatpush1.bf16.msra.mxu0 0
        %806 = vmatprep.subr.bf16.mxu0 0
        %807 = vmatpush1.bf16.msra.mxu0 0
        %808 = vmatprep.subr.bf16.mxu0 0
        %809 = vmatpush1.bf16.msra.mxu0 0
        %810 = vmatprep.subr.bf16.mxu0 0
        %811 = vmatpush1.bf16.msra.mxu0 0
        %812 = vmatprep.subr.bf16.mxu0 0
        %813 = vmatpush1.bf16.msra.mxu0 0
        %814 = vmatprep.mubr.bf16.mxu0 0
        %815 = vmatmul.mubr.bf16.gmra.mrb[0].mxu0 %v658
        %v816 = vpop.f32.mrb[0].mxu0
        %v817 = vadd.f32 %v695, %v816
        %v818 = vpop.f32.mrb[0].mxu0
        %v819 = vadd.f32 %v699, %v818
        %v820 = vpop.f32.mrb[0].mxu0
        %v821 = vadd.f32 %v695, %v820
        %v822 = vpop.f32.mrb[0].mxu0
        %v823 = vadd.f32 %v699, %v822
        %824 = vmatprep.mubr.bf16.mxu0 0
        %825 = vmatmul.mubr.bf16.gmra.mrb[0].mxu0 %v659
        %v826 = vpop.f32.mrb[0].mxu0
        %v827 = vadd.f32 %v695, %v826
        %v828 = vpop.f32.mrb[0].mxu0
        %v829 = vadd.f32 %v699, %v828
        %v830 = vpop.f32.mrb[0].mxu0
        %v831 = vadd.f32 %v695, %v830
        %v832 = vpop.f32.mrb[0].mxu0
        %v833 = vadd.f32 %v699, %v832
        %834 = vmatprep.mubr.bf16.mxu0 0
        %835 = vmatmul.mubr.bf16.gmra.mrb[0].mxu0 %v660
        %v836 = vpop.f32.mrb[0].mxu0
        %v837 = vadd.f32 %v695, %v836
        %v838 = vpop.f32.mrb[0].mxu0
        %v839 = vadd.f32 %v699, %v838
        %v840 = vpop.f32.mrb[0].mxu0
        %v841 = vadd.f32 %v695, %v840
        %v842 = vpop.f32.mrb[0].mxu0
        %v843 = vadd.f32 %v699, %v842
        %844 = vmatprep.mubr.bf16.mxu0 0
        %845 = vmatmul.mubr.bf16.gmra.mrb[0].mxu0 %v661
        %v846 = vpop.f32.mrb[0].mxu0
        %v847 = vadd.f32 %v695, %v846
        %v848 = vpop.f32.mrb[0].mxu0
        %v849 = vadd.f32 %v699, %v848
        %v850 = vpop.f32.mrb[0].mxu0
        %v851 = vadd.f32 %v695, %v850
        %v852 = vpop.f32.mrb[0].mxu0
        %v853 = vadd.f32 %v699, %v852
        %854 = vmatprep.mubr.bf16.mxu0 0
        %855 = vmatmul.mubr.bf16.gmra.mrb[0].mxu0 %v662
        %v856 = vpop.f32.mrb[0].mxu0
        %v857 = vadd.f32 %v695, %v856
        %v858 = vpop.f32.mrb[0].mxu0
        %v859 = vadd.f32 %v699, %v858
        %v860 = vpop.f32.mrb[0].mxu0
        %v861 = vadd.f32 %v695, %v860
        %v862 = vpop.f32.mrb[0].mxu0
        %v863 = vadd.f32 %v699, %v862
        %864 = vmatprep.mubr.bf16.mxu0 0
        %865 = vmatmul.mubr.bf16.gmra.mrb[0].mxu0 %v663
        %v866 = vpop.f32.mrb[0].mxu0
        %v867 = vadd.f32 %v695, %v866
        %v868 = vpop.f32.mrb[0].mxu0
        %v869 = vadd.f32 %v699, %v868
        %v870 = vpop.f32.mrb[0].mxu0
        %v871 = vadd.f32 %v695, %v870
        %v872 = vpop.f32.mrb[0].mxu0
        %v873 = vadd.f32 %v699, %v872
        %874 = vmatprep.mubr.bf16.mxu0 0
        %875 = vmatmul.mubr.bf16.gmra.mrb[0].mxu0 %v664
        %v876 = vpop.f32.mrb[0].mxu0
        %v877 = vadd.f32 %v695, %v876
        %v878 = vpop.f32.mrb[0].mxu0
        %v879 = vadd.f32 %v699, %v878
        %v880 = vpop.f32.mrb[0].mxu0
        %v881 = vadd.f32 %v695, %v880
        %v882 = vpop.f32.mrb[0].mxu0
        %v883 = vadd.f32 %v699, %v882
        %884 = vmatprep.mubr.bf16.mxu0 0
        %885 = vmatmul.mubr.bf16.gmra.mrb[0].mxu0 %v665
        %v886 = vpop.f32.mrb[0].mxu0
        %v887 = vadd.f32 %v695, %v886
        %v888 = vpop.f32.mrb[0].mxu0
        %v889 = vadd.f32 %v699, %v888
        %v890 = vpop.f32.mrb[0].mxu0
        %v891 = vadd.f32 %v695, %v890
        %v892 = vpop.f32.mrb[0].mxu0
        %v893 = vadd.f32 %v699, %v892
        %894 = vmatprep.mubr.bf16.mxu0 0
        %895 = vmatmul.mubr.bf16.gmra.mrb[0].mxu0 %v666
        %v896 = vpop.f32.mrb[0].mxu0
        %v897 = vadd.f32 %v695, %v896
        %v898 = vpop.f32.mrb[0].mxu0
        %v899 = vadd.f32 %v699, %v898
        %v900 = vpop.f32.mrb[0].mxu0
        %v901 = vadd.f32 %v695, %v900
        %v902 = vpop.f32.mrb[0].mxu0
        %v903 = vadd.f32 %v699, %v902
        %904 = vmatprep.mubr.bf16.mxu0 0
        %905 = vmatmul.mubr.bf16.gmra.mrb[0].mxu0 %v667
        %v906 = vpop.f32.mrb[0].mxu0
        %v907 = vadd.f32 %v695, %v906
        %v908 = vpop.f32.mrb[0].mxu0
        %v909 = vadd.f32 %v699, %v908
        %v910 = vpop.f32.mrb[0].mxu0
        %v911 = vadd.f32 %v695, %v910
        %v912 = vpop.f32.mrb[0].mxu0
        %v913 = vadd.f32 %v699, %v912
        %914 = vmatprep.mubr.bf16.mxu0 0
        %915 = vmatmul.mubr.bf16.gmra.mrb[0].mxu0 %v668
        %v916 = vpop.f32.mrb[0].mxu0
        %v917 = vadd.f32 %v695, %v916
        %v918 = vpop.f32.mrb[0].mxu0
        %v919 = vadd.f32 %v699, %v918
        %v920 = vpop.f32.mrb[0].mxu0
        %v921 = vadd.f32 %v695, %v920
        %v922 = vpop.f32.mrb[0].mxu0
        %v923 = vadd.f32 %v699, %v922
        %924 = vmatprep.mubr.bf16.mxu0 0
        %925 = vmatmul.mubr.bf16.gmra.mrb[0].mxu0 %v669
        %v926 = vpop.f32.mrb[0].mxu0
        %v927 = vadd.f32 %v695, %v926
        %v928 = vpop.f32.mrb[0].mxu0
        %v929 = vadd.f32 %v699, %v928
        %v930 = vpop.f32.mrb[0].mxu0
        %v931 = vadd.f32 %v695, %v930
        %v932 = vpop.f32.mrb[0].mxu0
        %v933 = vadd.f32 %v699, %v932
        %934 = vmatprep.mubr.bf16.mxu0 0
        %935 = vmatmul.mubr.bf16.gmra.mrb[0].mxu0 %v670
        %v936 = vpop.f32.mrb[0].mxu0
        %v937 = vadd.f32 %v695, %v936
        %v938 = vpop.f32.mrb[0].mxu0
        %v939 = vadd.f32 %v699, %v938
        %v940 = vpop.f32.mrb[0].mxu0
        %v941 = vadd.f32 %v695, %v940
        %v942 = vpop.f32.mrb[0].mxu0
        %v943 = vadd.f32 %v699, %v942
        %944 = vmatprep.mubr.bf16.mxu0 0
        %945 = vmatmul.mubr.bf16.gmra.mrb[0].mxu0 %v671
        %v946 = vpop.f32.mrb[0].mxu0
        %v947 = vadd.f32 %v695, %v946
        %v948 = vpop.f32.mrb[0].mxu0
        %v949 = vadd.f32 %v699, %v948
        %v950 = vpop.f32.mrb[0].mxu0
        %v951 = vadd.f32 %v695, %v950
        %v952 = vpop.f32.mrb[0].mxu0
        %v953 = vadd.f32 %v699, %v952
        %954 = vmatprep.mubr.bf16.mxu0 0
        %955 = vmatmul.mubr.bf16.gmra.mrb[0].mxu0 %v672
        %v956 = vpop.f32.mrb[0].mxu0
        %v957 = vadd.f32 %v695, %v956
        %v958 = vpop.f32.mrb[0].mxu0
        %v959 = vadd.f32 %v699, %v958
        %v960 = vpop.f32.mrb[0].mxu0
        %v961 = vadd.f32 %v695, %v960
        %v962 = vpop.f32.mrb[0].mxu0
        %v963 = vadd.f32 %v699, %v962
        %964 = vmatprep.mubr.bf16.mxu0 0
        %965 = vmatmul.mubr.bf16.gmra.mrb[0].mxu0 %v673
        %v966 = vpop.f32.mrb[0].mxu0
        %v967 = vadd.f32 %v695, %v966
        %v968 = vpop.f32.mrb[0].mxu0
        %v969 = vadd.f32 %v699, %v968
        %v970 = vpop.f32.mrb[0].mxu0
        %v971 = vadd.f32 %v695, %v970
        %v972 = vpop.f32.mrb[0].mxu0
        %v973 = vadd.f32 %v699, %v972
        %974 = vdwg.mxu0
        %v975 = vmax.f32 %v817, 0.0
        %v976 = vmax.f32 %v819, 0.0
        %v977 = vmax.f32 %v821, 0.0
        %v978 = vmax.f32 %v823, 0.0
        %v979 = vmax.f32 %v827, 0.0
        %v980 = vmax.f32 %v829, 0.0
        %v981 = vmax.f32 %v831, 0.0
        %v982 = vmax.f32 %v833, 0.0
        %v983 = vmax.f32 %v837, 0.0
        %v984 = vmax.f32 %v839, 0.0
        %v985 = vmax.f32 %v841, 0.0
        %v986 = vmax.f32 %v843, 0.0
        %v987 = vmax.f32 %v847, 0.0
        %v988 = vmax.f32 %v849, 0.0
        %v989 = vmax.f32 %v851, 0.0
        %v990 = vmax.f32 %v853, 0.0
        %v991 = vmax.f32 %v857, 0.0
        %v992 = vmax.f32 %v859, 0.0
        %v993 = vmax.f32 %v861, 0.0
        %v994 = vmax.f32 %v863, 0.0
        %v995 = vmax.f32 %v867, 0.0
        %v996 = vmax.f32 %v869, 0.0
        %v997 = vmax.f32 %v871, 0.0
        %v998 = vmax.f32 %v873, 0.0
        %v999 = vmax.f32 %v877, 0.0
        %v1000 = vmax.f32 %v879, 0.0
        %v1001 = vmax.f32 %v881, 0.0
        %v1002 = vmax.f32 %v883, 0.0
        %v1003 = vmax.f32 %v887, 0.0
        %v1004 = vmax.f32 %v889, 0.0
        %v1005 = vmax.f32 %v891, 0.0
        %v1006 = vmax.f32 %v893, 0.0
        %v1007 = vmax.f32 %v897, 0.0
        %v1008 = vmax.f32 %v899, 0.0
        %v1009 = vmax.f32 %v901, 0.0
        %v1010 = vmax.f32 %v903, 0.0
        %v1011 = vmax.f32 %v907, 0.0
        %v1012 = vmax.f32 %v909, 0.0
        %v1013 = vmax.f32 %v911, 0.0
        %v1014 = vmax.f32 %v913, 0.0
        %v1015 = vmax.f32 %v917, 0.0
        %v1016 = vmax.f32 %v919, 0.0
        %v1017 = vmax.f32 %v921, 0.0
        %v1018 = vmax.f32 %v923, 0.0
        %v1019 = vmax.f32 %v927, 0.0
        %v1020 = vmax.f32 %v929, 0.0
        %v1021 = vmax.f32 %v931, 0.0
        %v1022 = vmax.f32 %v933, 0.0
        %v1023 = vmax.f32 %v937, 0.0
        %v1024 = vmax.f32 %v939, 0.0
        %v1025 = vmax.f32 %v941, 0.0
        %v1026 = vmax.f32 %v943, 0.0
        %v1027 = vmax.f32 %v947, 0.0
        %v1028 = vmax.f32 %v949, 0.0
        %v1029 = vmax.f32 %v951, 0.0
        %v1030 = vmax.f32 %v953, 0.0
        %v1031 = vmax.f32 %v957, 0.0
        %v1032 = vmax.f32 %v959, 0.0
        %v1033 = vmax.f32 %v961, 0.0
        %v1034 = vmax.f32 %v963, 0.0
        %v1035 = vmax.f32 %v967, 0.0
        %v1036 = vmax.f32 %v969, 0.0
        %v1037 = vmax.f32 %v971, 0.0
        %v1038 = vmax.f32 %v973, 0.0
        %v1039 = vpack.c.bf16 %v977, %v975
        %v1040 = vpack.c.bf16 %v978, %v976
        %v1041 = vpack.c.bf16 %v981, %v979
        %v1042 = vpack.c.bf16 %v982, %v980
        %v1043 = vpack.c.bf16 %v985, %v983
        %v1044 = vpack.c.bf16 %v986, %v984
        %v1045 = vpack.c.bf16 %v989, %v987
        %v1046 = vpack.c.bf16 %v990, %v988
        %v1047 = vpack.c.bf16 %v993, %v991
        %v1048 = vpack.c.bf16 %v994, %v992
        %v1049 = vpack.c.bf16 %v997, %v995
        %v1050 = vpack.c.bf16 %v998, %v996
        %v1051 = vpack.c.bf16 %v1001, %v999
        %v1052 = vpack.c.bf16 %v1002, %v1000
        %v1053 = vpack.c.bf16 %v1005, %v1003
        %v1054 = vpack.c.bf16 %v1006, %v1004
        %v1055 = vpack.c.bf16 %v1009, %v1007
        %v1056 = vpack.c.bf16 %v1010, %v1008
        %v1057 = vpack.c.bf16 %v1013, %v1011
        %v1058 = vpack.c.bf16 %v1014, %v1012
        %v1059 = vpack.c.bf16 %v1017, %v1015
        %v1060 = vpack.c.bf16 %v1018, %v1016
        %v1061 = vpack.c.bf16 %v1021, %v1019
        %v1062 = vpack.c.bf16 %v1022, %v1020
        %v1063 = vpack.c.bf16 %v1025, %v1023
        %v1064 = vpack.c.bf16 %v1026, %v1024
        %v1065 = vpack.c.bf16 %v1029, %v1027
        %v1066 = vpack.c.bf16 %v1030, %v1028
        %v1067 = vpack.c.bf16 %v1033, %v1031
        %v1068 = vpack.c.bf16 %v1034, %v1032
        %v1069 = vpack.c.bf16 %v1037, %v1035
        %v1070 = vpack.c.bf16 %v1038, %v1036
        %v1071 = vld [vmem:[%s5] sm:$0xf]
        %v1072 = vld [vmem:[%s5 + $0x4] sm:$0xf]
        %v1073 = vld [vmem:[%s5 + $0x8] sm:$0xf]
        %v1074 = vld [vmem:[%s5 + $0xc] sm:$0xf]
        %v1075 = vld [vmem:[%s5 + $0x10] sm:$0xf]
        %v1076 = vld [vmem:[%s5 + $0x14] sm:$0xf]
        %v1077 = vld [vmem:[%s5 + $0x18] sm:$0xf]
        %v1078 = vld [vmem:[%s5 + $0x1c] sm:$0xf]
        %v1079 = vld [vmem:[%s5 + $0x20] sm:$0xf]
        %v1080 = vld [vmem:[%s5 + $0x24] sm:$0xf]
        %v1081 = vld [vmem:[%s5 + $0x28] sm:$0xf]
        %v1082 = vld [vmem:[%s5 + $0x2c] sm:$0xf]
        %v1083 = vld [vmem:[%s5 + $0x30] sm:$0xf]
        %v1084 = vld [vmem:[%s5 + $0x34] sm:$0xf]
        %v1085 = vld [vmem:[%s5 + $0x38] sm:$0xf]
        %v1086 = vld [vmem:[%s5 + $0x3c] sm:$0xf]
        %v1087 = vld [vmem:[%s5 + $0x40] sm:$0xf]
        %v1088 = vld [vmem:[%s5 + $0x44] sm:$0xf]
        %v1089 = vld [vmem:[%s5 + $0x48] sm:$0xf]
        %v1090 = vld [vmem:[%s5 + $0x4c] sm:$0xf]
        %v1091 = vld [vmem:[%s5 + $0x50] sm:$0xf]
        %v1092 = vld [vmem:[%s5 + $0x54] sm:$0xf]
        %v1093 = vld [vmem:[%s5 + $0x58] sm:$0xf]
        %v1094 = vld [vmem:[%s5 + $0x5c] sm:$0xf]
        %v1095 = vld [vmem:[%s5 + $0x60] sm:$0xf]
        %v1096 = vld [vmem:[%s5 + $0x64] sm:$0xf]
        %v1097 = vld [vmem:[%s5 + $0x68] sm:$0xf]
        %v1098 = vld [vmem:[%s5 + $0x6c] sm:$0xf]
        %v1099 = vld [vmem:[%s5 + $0x70] sm:$0xf]
        %v1100 = vld [vmem:[%s5 + $0x74] sm:$0xf]
        %v1101 = vld [vmem:[%s5 + $0x78] sm:$0xf]
        %v1102 = vld [vmem:[%s5 + $0x7c] sm:$0xf]
        %v1103 = vld [vmem:[%s6] sm:$0x1]
        %v1105 = vlaneseq
        %v1106 = vshrl.u32 %v1105, 7
        %v1107 = vsub.s32 0, %v1106
        %v1108 = vrot.slane %v1103, %v1107
        %v1142 = vunpack.c.l.b16 %v1071
        %v1143 = vunpack.c.l.b16 %v1072
        %v1144 = vunpack.c.l.b16 %v1073
        %v1145 = vunpack.c.l.b16 %v1074
        %v1146 = vunpack.c.l.b16 %v1075
        %v1147 = vunpack.c.l.b16 %v1076
        %v1148 = vunpack.c.l.b16 %v1077
        %v1149 = vunpack.c.l.b16 %v1078
        %v1150 = vunpack.c.l.b16 %v1079
        %v1151 = vunpack.c.l.b16 %v1080
        %v1152 = vunpack.c.l.b16 %v1081
        %v1153 = vunpack.c.l.b16 %v1082
        %v1154 = vunpack.c.l.b16 %v1083
        %v1155 = vunpack.c.l.b16 %v1084
        %v1156 = vunpack.c.l.b16 %v1085
        %v1157 = vunpack.c.l.b16 %v1086
        %v1158 = vunpack.c.l.b16 %v1087
        %v1159 = vunpack.c.l.b16 %v1088
        %v1160 = vunpack.c.l.b16 %v1089
        %v1161 = vunpack.c.l.b16 %v1090
        %v1162 = vunpack.c.l.b16 %v1091
        %v1163 = vunpack.c.l.b16 %v1092
        %v1164 = vunpack.c.l.b16 %v1093
        %v1165 = vunpack.c.l.b16 %v1094
        %v1166 = vunpack.c.l.b16 %v1095
        %v1167 = vunpack.c.l.b16 %v1096
        %v1168 = vunpack.c.l.b16 %v1097
        %v1169 = vunpack.c.l.b16 %v1098
        %v1170 = vunpack.c.l.b16 %v1099
        %v1171 = vunpack.c.l.b16 %v1100
        %v1172 = vunpack.c.l.b16 %v1101
        %v1173 = vunpack.c.l.b16 %v1102
        %v1174 = vpack.c.b16 %v1143, %v1142
        %v1175 = vpack.c.b16 %v1145, %v1144
        %v1176 = vpack.c.b16 %v1147, %v1146
        %v1177 = vpack.c.b16 %v1149, %v1148
        %v1178 = vpack.c.b16 %v1151, %v1150
        %v1179 = vpack.c.b16 %v1153, %v1152
        %v1180 = vpack.c.b16 %v1155, %v1154
        %v1181 = vpack.c.b16 %v1157, %v1156
        %v1182 = vpack.c.b16 %v1159, %v1158
        %v1183 = vpack.c.b16 %v1161, %v1160
        %v1184 = vpack.c.b16 %v1163, %v1162
        %v1185 = vpack.c.b16 %v1165, %v1164
        %v1186 = vpack.c.b16 %v1167, %v1166
        %v1187 = vpack.c.b16 %v1169, %v1168
        %v1188 = vpack.c.b16 %v1171, %v1170
        %v1189 = vpack.c.b16 %v1173, %v1172
        %1206 = vmatprep.subr.bf16.mxu0 0
        %1207 = vmatpush1.bf16.msra.mxu0 %v1174
        %1208 = vmatprep.subr.bf16.mxu0 0
        %1209 = vmatpush1.bf16.msra.mxu0 %v1175
        %1210 = vmatprep.subr.bf16.mxu0 0
        %1211 = vmatpush1.bf16.msra.mxu0 %v1176
        %1212 = vmatprep.subr.bf16.mxu0 0
        %1213 = vmatpush1.bf16.msra.mxu0 %v1177
        %1214 = vmatprep.subr.bf16.mxu0 0
        %1215 = vmatpush1.bf16.msra.mxu0 %v1178
        %1216 = vmatprep.subr.bf16.mxu0 0
        %1217 = vmatpush1.bf16.msra.mxu0 %v1179
        %1218 = vmatprep.subr.bf16.mxu0 0
        %1219 = vmatpush1.bf16.msra.mxu0 %v1180
        %1220 = vmatprep.subr.bf16.mxu0 0
        %1221 = vmatpush1.bf16.msra.mxu0 %v1181
        %1222 = vmatprep.subr.bf16.mxu0 0
        %1223 = vmatpush1.bf16.msra.mxu0 %v1182
        %1224 = vmatprep.subr.bf16.mxu0 0
        %1225 = vmatpush1.bf16.msra.mxu0 %v1183
        %1226 = vmatprep.subr.bf16.mxu0 0
        %1227 = vmatpush1.bf16.msra.mxu0 %v1184
        %1228 = vmatprep.subr.bf16.mxu0 0
        %1229 = vmatpush1.bf16.msra.mxu0 %v1185
        %1230 = vmatprep.subr.bf16.mxu0 0
        %1231 = vmatpush1.bf16.msra.mxu0 %v1186
        %1232 = vmatprep.subr.bf16.mxu0 0
        %1233 = vmatpush1.bf16.msra.mxu0 %v1187
        %1234 = vmatprep.subr.bf16.mxu0 0
        %1235 = vmatpush1.bf16.msra.mxu0 %v1188
        %1236 = vmatprep.subr.bf16.mxu0 0
        %1237 = vmatpush1.bf16.msra.mxu0 %v1189
        %1238 = vmatprep.mubr.bf16.mxu0 %v1040
        %1239 = vmatmul.mubr.bf16.gmra.mrb[0].mxu0 %v1039
        %v1240 = vpop.f32.mrb[0].mxu0
        %v1241 = vadd.f32 %v1108, %v1240
        %v1242 = vpop.f32.mrb[0].mxu0
        %v1243 = vpop.f32.mrb[0].mxu0
        %v1244 = vadd.f32 %v1108, %v1243
        %v1245 = vpop.f32.mrb[0].mxu0
        %1246 = vmatprep.mubr.bf16.mxu0 %v1042
        %1247 = vmatmul.mubr.bf16.gmra.mrb[0].mxu0 %v1041
        %v1248 = vpop.f32.mrb[0].mxu0
        %v1249 = vadd.f32 %v1108, %v1248
        %v1250 = vpop.f32.mrb[0].mxu0
        %v1251 = vpop.f32.mrb[0].mxu0
        %v1252 = vadd.f32 %v1108, %v1251
        %v1253 = vpop.f32.mrb[0].mxu0
        %1254 = vmatprep.mubr.bf16.mxu0 %v1044
        %1255 = vmatmul.mubr.bf16.gmra.mrb[0].mxu0 %v1043
        %v1256 = vpop.f32.mrb[0].mxu0
        %v1257 = vadd.f32 %v1108, %v1256
        %v1258 = vpop.f32.mrb[0].mxu0
        %v1259 = vpop.f32.mrb[0].mxu0
        %v1260 = vadd.f32 %v1108, %v1259
        %v1261 = vpop.f32.mrb[0].mxu0
        %1262 = vmatprep.mubr.bf16.mxu0 %v1046
        %1263 = vmatmul.mubr.bf16.gmra.mrb[0].mxu0 %v1045
        %v1264 = vpop.f32.mrb[0].mxu0
        %v1265 = vadd.f32 %v1108, %v1264
        %v1266 = vpop.f32.mrb[0].mxu0
        %v1267 = vpop.f32.mrb[0].mxu0
        %v1268 = vadd.f32 %v1108, %v1267
        %v1269 = vpop.f32.mrb[0].mxu0
        %1270 = vmatprep.mubr.bf16.mxu0 %v1048
        %1271 = vmatmul.mubr.bf16.gmra.mrb[0].mxu0 %v1047
        %v1272 = vpop.f32.mrb[0].mxu0
        %v1273 = vadd.f32 %v1108, %v1272
        %v1274 = vpop.f32.mrb[0].mxu0
        %v1275 = vpop.f32.mrb[0].mxu0
        %v1276 = vadd.f32 %v1108, %v1275
        %v1277 = vpop.f32.mrb[0].mxu0
        %1278 = vmatprep.mubr.bf16.mxu0 %v1050
        %1279 = vmatmul.mubr.bf16.gmra.mrb[0].mxu0 %v1049
        %v1280 = vpop.f32.mrb[0].mxu0
        %v1281 = vadd.f32 %v1108, %v1280
        %v1282 = vpop.f32.mrb[0].mxu0
        %v1283 = vpop.f32.mrb[0].mxu0
        %v1284 = vadd.f32 %v1108, %v1283
        %v1285 = vpop.f32.mrb[0].mxu0
        %1286 = vmatprep.mubr.bf16.mxu0 %v1052
        %1287 = vmatmul.mubr.bf16.gmra.mrb[0].mxu0 %v1051
        %v1288 = vpop.f32.mrb[0].mxu0
        %v1289 = vadd.f32 %v1108, %v1288
        %v1290 = vpop.f32.mrb[0].mxu0
        %v1291 = vpop.f32.mrb[0].mxu0
        %v1292 = vadd.f32 %v1108, %v1291
        %v1293 = vpop.f32.mrb[0].mxu0
        %1294 = vmatprep.mubr.bf16.mxu0 %v1054
        %1295 = vmatmul.mubr.bf16.gmra.mrb[0].mxu0 %v1053
        %v1296 = vpop.f32.mrb[0].mxu0
        %v1297 = vadd.f32 %v1108, %v1296
        %v1298 = vpop.f32.mrb[0].mxu0
        %v1299 = vpop.f32.mrb[0].mxu0
        %v1300 = vadd.f32 %v1108, %v1299
        %v1301 = vpop.f32.mrb[0].mxu0
        %1302 = vmatprep.mubr.bf16.mxu0 %v1056
        %1303 = vmatmul.mubr.bf16.gmra.mrb[0].mxu0 %v1055
        %v1304 = vpop.f32.mrb[0].mxu0
        %v1305 = vadd.f32 %v1108, %v1304
        %v1306 = vpop.f32.mrb[0].mxu0
        %v1307 = vpop.f32.mrb[0].mxu0
        %v1308 = vadd.f32 %v1108, %v1307
        %v1309 = vpop.f32.mrb[0].mxu0
        %1310 = vmatprep.mubr.bf16.mxu0 %v1058
        %1311 = vmatmul.mubr.bf16.gmra.mrb[0].mxu0 %v1057
        %v1312 = vpop.f32.mrb[0].mxu0
        %v1313 = vadd.f32 %v1108, %v1312
        %v1314 = vpop.f32.mrb[0].mxu0
        %v1315 = vpop.f32.mrb[0].mxu0
        %v1316 = vadd.f32 %v1108, %v1315
        %v1317 = vpop.f32.mrb[0].mxu0
        %1318 = vmatprep.mubr.bf16.mxu0 %v1060
        %1319 = vmatmul.mubr.bf16.gmra.mrb[0].mxu0 %v1059
        %v1320 = vpop.f32.mrb[0].mxu0
        %v1321 = vadd.f32 %v1108, %v1320
        %v1322 = vpop.f32.mrb[0].mxu0
        %v1323 = vpop.f32.mrb[0].mxu0
        %v1324 = vadd.f32 %v1108, %v1323
        %v1325 = vpop.f32.mrb[0].mxu0
        %1326 = vmatprep.mubr.bf16.mxu0 %v1062
        %1327 = vmatmul.mubr.bf16.gmra.mrb[0].mxu0 %v1061
        %v1328 = vpop.f32.mrb[0].mxu0
        %v1329 = vadd.f32 %v1108, %v1328
        %v1330 = vpop.f32.mrb[0].mxu0
        %v1331 = vpop.f32.mrb[0].mxu0
        %v1332 = vadd.f32 %v1108, %v1331
        %v1333 = vpop.f32.mrb[0].mxu0
        %1334 = vmatprep.mubr.bf16.mxu0 %v1064
        %1335 = vmatmul.mubr.bf16.gmra.mrb[0].mxu0 %v1063
        %v1336 = vpop.f32.mrb[0].mxu0
        %v1337 = vadd.f32 %v1108, %v1336
        %v1338 = vpop.f32.mrb[0].mxu0
        %v1339 = vpop.f32.mrb[0].mxu0
        %v1340 = vadd.f32 %v1108, %v1339
        %v1341 = vpop.f32.mrb[0].mxu0
        %1342 = vmatprep.mubr.bf16.mxu0 %v1066
        %1343 = vmatmul.mubr.bf16.gmra.mrb[0].mxu0 %v1065
        %v1344 = vpop.f32.mrb[0].mxu0
        %v1345 = vadd.f32 %v1108, %v1344
        %v1346 = vpop.f32.mrb[0].mxu0
        %v1347 = vpop.f32.mrb[0].mxu0
        %v1348 = vadd.f32 %v1108, %v1347
        %v1349 = vpop.f32.mrb[0].mxu0
        %1350 = vmatprep.mubr.bf16.mxu0 %v1068
        %1351 = vmatmul.mubr.bf16.gmra.mrb[0].mxu0 %v1067
        %v1352 = vpop.f32.mrb[0].mxu0
        %v1353 = vadd.f32 %v1108, %v1352
        %v1354 = vpop.f32.mrb[0].mxu0
        %v1355 = vpop.f32.mrb[0].mxu0
        %v1356 = vadd.f32 %v1108, %v1355
        %v1357 = vpop.f32.mrb[0].mxu0
        %1358 = vmatprep.mubr.bf16.mxu0 %v1070
        %1359 = vmatmul.mubr.bf16.gmra.mrb[0].mxu0 %v1069
        %v1360 = vpop.f32.mrb[0].mxu0
        %v1361 = vadd.f32 %v1108, %v1360
        %v1362 = vpop.f32.mrb[0].mxu0
        %v1363 = vpop.f32.mrb[0].mxu0
        %v1364 = vadd.f32 %v1108, %v1363
        %v1365 = vpop.f32.mrb[0].mxu0
        %1366 = vdwg.mxu0
        %v1367 = vxor.u32 %v1241, 2147483648
        %v1368 = vxor.u32 %v1244, 2147483648
        %v1369 = vxor.u32 %v1249, 2147483648
        %v1370 = vxor.u32 %v1252, 2147483648
        %v1371 = vxor.u32 %v1257, 2147483648
        %v1372 = vxor.u32 %v1260, 2147483648
        %v1373 = vxor.u32 %v1265, 2147483648
        %v1374 = vxor.u32 %v1268, 2147483648
        %v1375 = vxor.u32 %v1273, 2147483648
        %v1376 = vxor.u32 %v1276, 2147483648
        %v1377 = vxor.u32 %v1281, 2147483648
        %v1378 = vxor.u32 %v1284, 2147483648
        %v1379 = vxor.u32 %v1289, 2147483648
        %v1380 = vxor.u32 %v1292, 2147483648
        %v1381 = vxor.u32 %v1297, 2147483648
        %v1382 = vxor.u32 %v1300, 2147483648
        %v1383 = vxor.u32 %v1305, 2147483648
        %v1384 = vxor.u32 %v1308, 2147483648
        %v1385 = vxor.u32 %v1313, 2147483648
        %v1386 = vxor.u32 %v1316, 2147483648
        %v1387 = vxor.u32 %v1321, 2147483648
        %v1388 = vxor.u32 %v1324, 2147483648
        %v1389 = vxor.u32 %v1329, 2147483648
        %v1390 = vxor.u32 %v1332, 2147483648
        %v1391 = vxor.u32 %v1337, 2147483648
        %v1392 = vxor.u32 %v1340, 2147483648
        %v1393 = vxor.u32 %v1345, 2147483648
        %v1394 = vxor.u32 %v1348, 2147483648
        %v1395 = vxor.u32 %v1353, 2147483648
        %v1396 = vxor.u32 %v1356, 2147483648
        %v1397 = vxor.u32 %v1361, 2147483648
        %v1398 = vxor.u32 %v1364, 2147483648
        %v1399 = vmul.f32 %v1367, 1.442695
        %v1400 = vpow.pop %v1399
        %v1401 = vmul.f32 %v1368, 1.442695
        %v1402 = vpow.pop %v1401
        %v1403 = vmul.f32 %v1369, 1.442695
        %v1404 = vpow.pop %v1403
        %v1405 = vmul.f32 %v1370, 1.442695
        %v1406 = vpow.pop %v1405
        %v1407 = vmul.f32 %v1371, 1.442695
        %v1408 = vpow.pop %v1407
        %v1409 = vmul.f32 %v1372, 1.442695
        %v1410 = vpow.pop %v1409
        %v1411 = vmul.f32 %v1373, 1.442695
        %v1412 = vpow.pop %v1411
        %v1413 = vmul.f32 %v1374, 1.442695
        %v1414 = vpow.pop %v1413
        %v1415 = vmul.f32 %v1375, 1.442695
        %v1416 = vpow.pop %v1415
        %v1417 = vmul.f32 %v1376, 1.442695
        %v1418 = vpow.pop %v1417
        %v1419 = vmul.f32 %v1377, 1.442695
        %v1420 = vpow.pop %v1419
        %v1421 = vmul.f32 %v1378, 1.442695
        %v1422 = vpow.pop %v1421
        %v1423 = vmul.f32 %v1379, 1.442695
        %v1424 = vpow.pop %v1423
        %v1425 = vmul.f32 %v1380, 1.442695
        %v1426 = vpow.pop %v1425
        %v1427 = vmul.f32 %v1381, 1.442695
        %v1428 = vpow.pop %v1427
        %v1429 = vmul.f32 %v1382, 1.442695
        %v1430 = vpow.pop %v1429
        %v1431 = vmul.f32 %v1383, 1.442695
        %v1432 = vpow.pop %v1431
        %v1433 = vmul.f32 %v1384, 1.442695
        %v1434 = vpow.pop %v1433
        %v1435 = vmul.f32 %v1385, 1.442695
        %v1436 = vpow.pop %v1435
        %v1437 = vmul.f32 %v1386, 1.442695
        %v1438 = vpow.pop %v1437
        %v1439 = vmul.f32 %v1387, 1.442695
        %v1440 = vpow.pop %v1439
        %v1441 = vmul.f32 %v1388, 1.442695
        %v1442 = vpow.pop %v1441
        %v1443 = vmul.f32 %v1389, 1.442695
        %v1444 = vpow.pop %v1443
        %v1445 = vmul.f32 %v1390, 1.442695
        %v1446 = vpow.pop %v1445
        %v1447 = vmul.f32 %v1391, 1.442695
        %v1448 = vpow.pop %v1447
        %v1449 = vmul.f32 %v1392, 1.442695
        %v1450 = vpow.pop %v1449
        %v1451 = vmul.f32 %v1393, 1.442695
        %v1452 = vpow.pop %v1451
        %v1453 = vmul.f32 %v1394, 1.442695
        %v1454 = vpow.pop %v1453
        %v1455 = vmul.f32 %v1395, 1.442695
        %v1456 = vpow.pop %v1455
        %v1457 = vmul.f32 %v1396, 1.442695
        %v1458 = vpow.pop %v1457
        %v1459 = vmul.f32 %v1397, 1.442695
        %v1460 = vpow.pop %v1459
        %v1461 = vmul.f32 %v1398, 1.442695
        %v1462 = vpow.pop %v1461
        %v1463 = vadd.f32 %v1400, 1.0
        %v1464 = vadd.f32 %v1402, 1.0
        %v1465 = vadd.f32 %v1404, 1.0
        %v1466 = vadd.f32 %v1406, 1.0
        %v1467 = vadd.f32 %v1408, 1.0
        %v1468 = vadd.f32 %v1410, 1.0
        %v1469 = vadd.f32 %v1412, 1.0
        %v1470 = vadd.f32 %v1414, 1.0
        %v1471 = vadd.f32 %v1416, 1.0
        %v1472 = vadd.f32 %v1418, 1.0
        %v1473 = vadd.f32 %v1420, 1.0
        %v1474 = vadd.f32 %v1422, 1.0
        %v1475 = vadd.f32 %v1424, 1.0
        %v1476 = vadd.f32 %v1426, 1.0
        %v1477 = vadd.f32 %v1428, 1.0
        %v1478 = vadd.f32 %v1430, 1.0
        %v1479 = vadd.f32 %v1432, 1.0
        %v1480 = vadd.f32 %v1434, 1.0
        %v1481 = vadd.f32 %v1436, 1.0
        %v1482 = vadd.f32 %v1438, 1.0
        %v1483 = vadd.f32 %v1440, 1.0
        %v1484 = vadd.f32 %v1442, 1.0
        %v1485 = vadd.f32 %v1444, 1.0
        %v1486 = vadd.f32 %v1446, 1.0
        %v1487 = vadd.f32 %v1448, 1.0
        %v1488 = vadd.f32 %v1450, 1.0
        %v1489 = vadd.f32 %v1452, 1.0
        %v1490 = vadd.f32 %v1454, 1.0
        %v1491 = vadd.f32 %v1456, 1.0
        %v1492 = vadd.f32 %v1458, 1.0
        %v1493 = vadd.f32 %v1460, 1.0
        %v1494 = vadd.f32 %v1462, 1.0
        %v1495 = vrcp.pop %v1463
        %v1496 = vmul.f32 1.0, %v1495
        %v1497 = vrcp.pop %v1464
        %v1498 = vmul.f32 1.0, %v1497
        %v1499 = vrcp.pop %v1465
        %v1500 = vmul.f32 1.0, %v1499
        %v1501 = vrcp.pop %v1466
        %v1502 = vmul.f32 1.0, %v1501
        %v1503 = vrcp.pop %v1467
        %v1504 = vmul.f32 1.0, %v1503
        %v1505 = vrcp.pop %v1468
        %v1506 = vmul.f32 1.0, %v1505
        %v1507 = vrcp.pop %v1469
        %v1508 = vmul.f32 1.0, %v1507
        %v1509 = vrcp.pop %v1470
        %v1510 = vmul.f32 1.0, %v1509
        %v1511 = vrcp.pop %v1471
        %v1512 = vmul.f32 1.0, %v1511
        %v1513 = vrcp.pop %v1472
        %v1514 = vmul.f32 1.0, %v1513
        %v1515 = vrcp.pop %v1473
        %v1516 = vmul.f32 1.0, %v1515
        %v1517 = vrcp.pop %v1474
        %v1518 = vmul.f32 1.0, %v1517
        %v1519 = vrcp.pop %v1475
        %v1520 = vmul.f32 1.0, %v1519
        %v1521 = vrcp.pop %v1476
        %v1522 = vmul.f32 1.0, %v1521
        %v1523 = vrcp.pop %v1477
        %v1524 = vmul.f32 1.0, %v1523
        %v1525 = vrcp.pop %v1478
        %v1526 = vmul.f32 1.0, %v1525
        %v1527 = vrcp.pop %v1479
        %v1528 = vmul.f32 1.0, %v1527
        %v1529 = vrcp.pop %v1480
        %v1530 = vmul.f32 1.0, %v1529
        %v1531 = vrcp.pop %v1481
        %v1532 = vmul.f32 1.0, %v1531
        %v1533 = vrcp.pop %v1482
        %v1534 = vmul.f32 1.0, %v1533
        %v1535 = vrcp.pop %v1483
        %v1536 = vmul.f32 1.0, %v1535
        %v1537 = vrcp.pop %v1484
        %v1538 = vmul.f32 1.0, %v1537
        %v1539 = vrcp.pop %v1485
        %v1540 = vmul.f32 1.0, %v1539
        %v1541 = vrcp.pop %v1486
        %v1542 = vmul.f32 1.0, %v1541
        %v1543 = vrcp.pop %v1487
        %v1544 = vmul.f32 1.0, %v1543
        %v1545 = vrcp.pop %v1488
        %v1546 = vmul.f32 1.0, %v1545
        %v1547 = vrcp.pop %v1489
        %v1548 = vmul.f32 1.0, %v1547
        %v1549 = vrcp.pop %v1490
        %v1550 = vmul.f32 1.0, %v1549
        %v1551 = vrcp.pop %v1491
        %v1552 = vmul.f32 1.0, %v1551
        %v1553 = vrcp.pop %v1492
        %v1554 = vmul.f32 1.0, %v1553
        %v1555 = vrcp.pop %v1493
        %v1556 = vmul.f32 1.0, %v1555
        %v1557 = vrcp.pop %v1494
        %v1558 = vmul.f32 1.0, %v1557
        %v1559 = vpack.c.bf16 %v1498, %v1496
        %v1560 = vpack.c.bf16 %v1502, %v1500
        %v1561 = vpack.c.bf16 %v1506, %v1504
        %v1562 = vpack.c.bf16 %v1510, %v1508
        %v1563 = vpack.c.bf16 %v1514, %v1512
        %v1564 = vpack.c.bf16 %v1518, %v1516
        %v1565 = vpack.c.bf16 %v1522, %v1520
        %v1566 = vpack.c.bf16 %v1526, %v1524
        %v1567 = vpack.c.bf16 %v1530, %v1528
        %v1568 = vpack.c.bf16 %v1534, %v1532
        %v1569 = vpack.c.bf16 %v1538, %v1536
        %v1570 = vpack.c.bf16 %v1542, %v1540
        %v1571 = vpack.c.bf16 %v1546, %v1544
        %v1572 = vpack.c.bf16 %v1550, %v1548
        %v1573 = vpack.c.bf16 %v1554, %v1552
        %v1574 = vpack.c.bf16 %v1558, %v1556
        %v1591 = vunpack.c.l.b16 %v1559
        %v1592 = vunpack.c.h.b16 %v1559
        %v1593 = vunpack.c.l.b16 %v1560
        %v1594 = vunpack.c.h.b16 %v1560
        %v1595 = vunpack.c.l.b16 %v1561
        %v1596 = vunpack.c.h.b16 %v1561
        %v1597 = vunpack.c.l.b16 %v1562
        %v1598 = vunpack.c.h.b16 %v1562
        %v1599 = vunpack.c.l.b16 %v1563
        %v1600 = vunpack.c.h.b16 %v1563
        %v1601 = vunpack.c.l.b16 %v1564
        %v1602 = vunpack.c.h.b16 %v1564
        %v1603 = vunpack.c.l.b16 %v1565
        %v1604 = vunpack.c.h.b16 %v1565
        %v1605 = vunpack.c.l.b16 %v1566
        %v1606 = vunpack.c.h.b16 %v1566
        %v1607 = vunpack.c.l.b16 %v1567
        %v1608 = vunpack.c.h.b16 %v1567
        %v1609 = vunpack.c.l.b16 %v1568
        %v1610 = vunpack.c.h.b16 %v1568
        %v1611 = vunpack.c.l.b16 %v1569
        %v1612 = vunpack.c.h.b16 %v1569
        %v1613 = vunpack.c.l.b16 %v1570
        %v1614 = vunpack.c.h.b16 %v1570
        %v1615 = vunpack.c.l.b16 %v1571
        %v1616 = vunpack.c.h.b16 %v1571
        %v1617 = vunpack.c.l.b16 %v1572
        %v1618 = vunpack.c.h.b16 %v1572
        %v1619 = vunpack.c.l.b16 %v1573
        %v1620 = vunpack.c.h.b16 %v1573
        %v1621 = vunpack.c.l.b16 %v1574
        %v1622 = vunpack.c.h.b16 %v1574
        %v1623 = vpack.c.b16 %v1591, %v1591
        %v1624 = vpack.c.b16 %v1592, %v1592
        %v1625 = vpack.c.b16 %v1593, %v1593
        %v1626 = vpack.c.b16 %v1594, %v1594
        %v1627 = vpack.c.b16 %v1595, %v1595
        %v1628 = vpack.c.b16 %v1596, %v1596
        %v1629 = vpack.c.b16 %v1597, %v1597
        %v1630 = vpack.c.b16 %v1598, %v1598
        %v1631 = vpack.c.b16 %v1599, %v1599
        %v1632 = vpack.c.b16 %v1600, %v1600
        %v1633 = vpack.c.b16 %v1601, %v1601
        %v1634 = vpack.c.b16 %v1602, %v1602
        %v1635 = vpack.c.b16 %v1603, %v1603
        %v1636 = vpack.c.b16 %v1604, %v1604
        %v1637 = vpack.c.b16 %v1605, %v1605
        %v1638 = vpack.c.b16 %v1606, %v1606
        %v1639 = vpack.c.b16 %v1607, %v1607
        %v1640 = vpack.c.b16 %v1608, %v1608
        %v1641 = vpack.c.b16 %v1609, %v1609
        %v1642 = vpack.c.b16 %v1610, %v1610
        %v1643 = vpack.c.b16 %v1611, %v1611
        %v1644 = vpack.c.b16 %v1612, %v1612
        %v1645 = vpack.c.b16 %v1613, %v1613
        %v1646 = vpack.c.b16 %v1614, %v1614
        %v1647 = vpack.c.b16 %v1615, %v1615
        %v1648 = vpack.c.b16 %v1616, %v1616
        %v1649 = vpack.c.b16 %v1617, %v1617
        %v1650 = vpack.c.b16 %v1618, %v1618
        %v1651 = vpack.c.b16 %v1619, %v1619
        %v1652 = vpack.c.b16 %v1620, %v1620
        %v1653 = vpack.c.b16 %v1621, %v1621
        %v1654 = vpack.c.b16 %v1622, %v1622
        %1687 = vst [vmem:[%s272] sm:$0xf] %v1623
        %1688 = vst [vmem:[%s272 + $0x4] sm:$0xf] %v1624
        %1689 = vst [vmem:[%s272 + $0x8] sm:$0xf] %v1625
        %1690 = vst [vmem:[%s272 + $0xc] sm:$0xf] %v1626
        %1691 = vst [vmem:[%s272 + $0x10] sm:$0xf] %v1627
        %1692 = vst [vmem:[%s272 + $0x14] sm:$0xf] %v1628
        %1693 = vst [vmem:[%s272 + $0x18] sm:$0xf] %v1629
        %1694 = vst [vmem:[%s272 + $0x1c] sm:$0xf] %v1630
        %1695 = vst [vmem:[%s272 + $0x20] sm:$0xf] %v1631
        %1696 = vst [vmem:[%s272 + $0x24] sm:$0xf] %v1632
        %1697 = vst [vmem:[%s272 + $0x28] sm:$0xf] %v1633
        %1698 = vst [vmem:[%s272 + $0x2c] sm:$0xf] %v1634
        %1699 = vst [vmem:[%s272 + $0x30] sm:$0xf] %v1635
        %1700 = vst [vmem:[%s272 + $0x34] sm:$0xf] %v1636
        %1701 = vst [vmem:[%s272 + $0x38] sm:$0xf] %v1637
        %1702 = vst [vmem:[%s272 + $0x3c] sm:$0xf] %v1638
        %1703 = vst [vmem:[%s272 + $0x40] sm:$0xf] %v1639
        %1704 = vst [vmem:[%s272 + $0x44] sm:$0xf] %v1640
        %1705 = vst [vmem:[%s272 + $0x48] sm:$0xf] %v1641
        %1706 = vst [vmem:[%s272 + $0x4c] sm:$0xf] %v1642
        %1707 = vst [vmem:[%s272 + $0x50] sm:$0xf] %v1643
        %1708 = vst [vmem:[%s272 + $0x54] sm:$0xf] %v1644
        %1709 = vst [vmem:[%s272 + $0x58] sm:$0xf] %v1645
        %1710 = vst [vmem:[%s272 + $0x5c] sm:$0xf] %v1646
        %1711 = vst [vmem:[%s272 + $0x60] sm:$0xf] %v1647
        %1712 = vst [vmem:[%s272 + $0x64] sm:$0xf] %v1648
        %1713 = vst [vmem:[%s272 + $0x68] sm:$0xf] %v1649
        %1714 = vst [vmem:[%s272 + $0x6c] sm:$0xf] %v1650
        %1715 = vst [vmem:[%s272 + $0x70] sm:$0xf] %v1651
        %1716 = vst [vmem:[%s272 + $0x74] sm:$0xf] %v1652
        %1717 = vst [vmem:[%s272 + $0x78] sm:$0xf] %v1653
        %1718 = vst [vmem:[%s272 + $0x7c] sm:$0xf] %v1654
        %s1719 = sand.u32 %s181, 1
        %s1720 = scalar_lea.sflag [#allocation3], %s1719
        %s1721 = sand.u32 %s181, 1
        %s1722 = smul.addr %s1721, 128
        %s1723 = scalar_lea.vmem [#allocation2], %s1722
        // Predicated region
        $region49: #{tpu_custom_call.1} parent=47 // pred_check
          %p1724 = pneg %p191
        $region50: #{tpu_custom_call.1} parent=47 // pred_check_branch
          %1726 = sbr.rel (%p1724) target = $region52
        $region51: #{tpu_custom_call.1} parent=47 // pred_region
          %s1727 = smul.u32 32, %s21
          %s1729 = ssub.s32 2048, 2048
          %1730 = vsyncadd %s1720, %s1729
          %s1731 = smul.addr %s1727, 64
          %s1732 = scalar_lea.hbm %s7, %s1731
          %s1733 = sshll.u32 %s1723, 4
          %s1734 = int_to_ptr.vmem [resolvable:$true] %s1733
          %1739 = dma.vmem_to_hbm [thread:$0]  %s1734, 2048, %s1732, %s1720, 64, 64, 4
        $region52: #{tpu_custom_call.1} parent=47 // pred_fallthru
          _
      $region48: #{tpu_custom_call.1} parent=5 // pred_fallthru
        _
      %p1740 = scmp.le.s32.totalorder 2, %s16
      // Predicated region
      $region53: #{tpu_custom_call.1} parent=5 // pred_check
        %p1741 = pneg %p1740
      $region54: #{tpu_custom_call.1} parent=5 // pred_check_branch
        %1743 = sbr.rel (%p1741) target = $region56
      $region55: #{tpu_custom_call.1} parent=5 // pred_region
        %s1744 = ssub.s32 %s16, 2
        // Predicated region
        $region57: #{tpu_custom_call.1} parent=55 // pred_check
          %p1745 = pneg %p197
        $region58: #{tpu_custom_call.1} parent=55 // pred_check_branch
          %1747 = sbr.rel (%p1745) target = $region60
        $region59: #{tpu_custom_call.1} parent=55 // pred_region
          %s1748 = sand.u32 %s182, 1
          %s1749 = scalar_lea.sflag [#allocation3], %s1748
          %s1750 = sand.u32 %s182, 1
          %s1751 = smul.addr %s1750, 128
          %s1752 = scalar_lea.vmem [#allocation2], %s1751
          %1753 = dma.done %s1749, 2048
        $region60: #{tpu_custom_call.1} parent=55 // pred_fallthru
          _
      $region56: #{tpu_custom_call.1} parent=5 // pred_fallthru
        _
    $region6: #{tpu_custom_call.1} parent=1 // loop_footer
      %s20 = sadd.s32 1, %s16
    $region7: #{tpu_custom_call.1} parent=1 // loop_footer_branch
      %15 = sbr.rel target = $region3
    $region8: #{tpu_custom_call.1} parent=1 // loop_exit
      _
    %1754 = vsyncpa [#allocation3], 1
    %s1755 = scalar_lea.sflag [#allocation3], 1
    %1756 = vsyncpa %s1755, 1

</llo_original>
